<compile_context>
chip_gen: v5e
topology: v5e:2x2
jax: 0.10.0
libtpu: 0.0.40
codegen_flags: <defaults>
</compile_context>

<pallas_src>
import functools

import jax
import jax.numpy as jnp
from jax.experimental import pallas as pl
from jax.experimental.pallas import tpu as pltpu

EPS = 1e-5        # nn.BatchNorm2d default eps
SLOPE = 0.01      # nn.LeakyReLU default negative_slope
K, DIL, PAD = 3, 3, 3

# Safe on v7x (64 MiB physical VMEM); can be raised toward ~100 MiB on
# v5e/v6e for larger width tiles.
VMEM_LIMIT = 48 * 1024 * 1024


def _round_up(a, b):
    return ((a + b - 1) // b) * b


def _conv_stats_kernel(xt_ref, w_ref, mask_ref, y_ref, stats_ref, *,
                       cblk, offp, tw, deltas):
    # xt_ref  : (1, C, TWE)      f32  haloed, channel-major, lane-flat tile
    # w_ref   : (9, CBLK, C)     bf16 per-tap weight matrices for this C-block
    # mask_ref: (1, 1, TW)       f32  1.0 at real (non-pad, non-tail) pixels
    # y_ref   : (CBLK, TW)       f32  pre-BN conv output tile
    # stats   : (1, CBLK, 128)   f32  lane0 = masked sum, lane1 = masked sumsq
    xb = xt_ref[0].astype(jnp.bfloat16)            # one cast, reused by 9 taps

    # Dilated 3x3 conv as 9 accumulated MXU matmuls on shifted views of the
    # same tile (no im2col staging; realignment rides the XLU, overlapped).
    acc = jnp.zeros((cblk, tw), jnp.float32)
    for t, d in enumerate(deltas):
        acc = acc + jnp.dot(w_ref[t], xb[:, offp + d: offp + d + tw],
                            preferred_element_type=jnp.float32)
    # Conv bias intentionally omitted: train-mode BN's mean subtraction
    # cancels any per-channel constant exactly.
    y_ref[...] = acc

    # Masked per-tile BN partial statistics (combined in the wrapper).
    m = mask_ref[0]                                 # (1, tw)
    am = acc * m
    s = jnp.sum(am, axis=1, keepdims=True)[None]    # (1, cblk, 1)
    s2 = jnp.sum(am * acc, axis=1, keepdims=True)[None]
    lane = jax.lax.broadcasted_iota(jnp.int32, (1, cblk, 128), 2)
    stats_ref[...] = jnp.where(lane == 0, s, 0.0) + jnp.where(lane == 1, s2, 0.0)


def _bn_act_res_kernel(y_ref, x_ref, scale_ref, shift_ref, o_ref):
    # y*scale + shift  ->  LeakyReLU  ->  + residual (f32 exact)
    y = y_ref[...] * scale_ref[...] + shift_ref[...]
    y = jnp.where(y >= 0.0, y, SLOPE * y)
    o_ref[...] = (x_ref[...] + y).astype(o_ref.dtype)


def residual_block(x, weight, bias, gamma, beta):
    """x: (N, C, H, W) f32; weight: (C, C, 3, 3) torch (co, ci, kh, kw) layout.

    `bias` is accepted for API parity but unused: training-mode BatchNorm
    subtracts the batch mean, so the conv bias cancels exactly."""
    del bias
    N, C, H, W = x.shape
    Hp, Wp = H + 2 * PAD, W + 2 * PAD
    Lp, NLp = Hp * Wp, N * Hp * Wp

    max_shift = DIL * Wp + DIL                 # largest |tap shift| (flat coords)
    OFFP = _round_up(max_shift, 128)           # 128-aligned halo width

    # Lane tile: keep >= 2 width tiles when possible (both v7x TCs busy even
    # with a single output-channel block), capped for VMEM fit at large sizes.
    WIDTH = _round_up(NLp, 128)
    if WIDTH <= 256:
        TW = WIDTH
    elif WIDTH <= 4096:
        TW = _round_up(WIDTH // 2, 128)
    else:
        TW = 4096
    WIDTH_T = _round_up(WIDTH, TW)
    n_wt = WIDTH_T // TW
    TWE = TW + 2 * OFFP

    # Output-channel block: near-full MXU row utilization.
    if C <= 128:
        CBLK = C
    elif C % 128 == 0:
        CBLK = 128
    else:
        CBLK = C  # TODO(synk): pad C to a multiple of 128 for odd large C
    n_cb = C // CBLK

    # ---- wrapper layout plumbing (one pass each) ----------------------------
    # Channel-major, zero-padded (H,W), lane-flattened, tail-padded slab (f32,
    # shared by the residual read in pass 2).
    xflat = jnp.pad(x, ((0, 0), (0, 0), (PAD, PAD), (PAD, PAD)))
    xflat = xflat.transpose(1, 0, 2, 3).reshape(C, NLp)
    xres = jnp.pad(xflat, ((0, 0), (0, WIDTH_T - NLp)))          # (C, WIDTH_T)

    # Overlapping (haloed) width tiles for the conv, gathered once.
    pos = jnp.arange(n_wt)[:, None] * TW + jnp.arange(TWE)[None, :] - OFFP
    inb = (pos >= 0) & (pos < WIDTH_T)
    xtiles = jnp.where(inb[None, :, :],
                       xres[:, jnp.clip(pos, 0, WIDTH_T - 1)], 0.0)
    xtiles = xtiles.transpose(1, 0, 2)                           # (n_wt, C, TWE)

    # Weights as (tap, co, ci) in bf16 for the MXU (f32 accumulation in-kernel).
    wt = weight.transpose(2, 3, 0, 1).reshape(K * K, C, C).astype(jnp.bfloat16)

    # 1/0 mask of lanes that are real (n, h, w) output pixels.
    j = jnp.arange(WIDTH_T)
    hp = (j % Lp) // Wp
    wp = j % Wp
    valid = (j < NLp) & (hp >= PAD) & (hp < PAD + H) & (wp >= PAD) & (wp < PAD + W)
    maskt = valid.astype(jnp.float32).reshape(n_wt, 1, TW)

    # Flat lane shift of tap (kh, kw) relative to the output position.
    deltas = tuple(DIL * (kh - 1) * Wp + DIL * (kw - 1)
                   for kh in range(K) for kw in range(K))

    # ---- pass 1: dilated conv (9 accumulated MXU matmuls) + partial stats ---
    conv_kernel = functools.partial(_conv_stats_kernel, cblk=CBLK, offp=OFFP,
                                    tw=TW, deltas=deltas)
    y1, pstats = pl.pallas_call(
        conv_kernel,
        out_shape=(jax.ShapeDtypeStruct((C, WIDTH_T), jnp.float32),
                   jax.ShapeDtypeStruct((n_wt, C, 128), jnp.float32)),
        grid=(n_cb, n_wt),
        in_specs=[
            pl.BlockSpec((1, C, TWE), lambda i, j: (j, 0, 0)),       # haloed tile
            pl.BlockSpec((K * K, CBLK, C), lambda i, j: (0, i, 0)),  # tap weights
            pl.BlockSpec((1, 1, TW), lambda i, j: (j, 0, 0)),        # valid mask
        ],
        out_specs=(pl.BlockSpec((CBLK, TW), lambda i, j: (i, j)),
                   pl.BlockSpec((1, CBLK, 128), lambda i, j: (j, i, 0))),
        compiler_params=pltpu.CompilerParams(
            dimension_semantics=("parallel", "parallel"),
            vmem_limit_bytes=VMEM_LIMIT),
    )(xtiles, wt, maskt)

    # ---- tiny cross-tile stat combine + BN affine fold (C-sized, in XLA) ----
    count = float(N * H * W)
    mean = jnp.sum(pstats[:, :, 0], axis=0) / count
    # Single-pass E[y^2]-E[y]^2 in f32 (fine at this scale/tolerance).
    # TODO(synk): use a shifted/two-pass variance for large-|mean| activations.
    var = jnp.maximum(jnp.sum(pstats[:, :, 1], axis=0) / count - mean * mean, 0.0)
    scale = gamma.astype(jnp.float32) * jax.lax.rsqrt(var + EPS)
    shift = beta.astype(jnp.float32) - mean * scale
    scale2 = scale.reshape(C, 1)
    shift2 = shift.reshape(C, 1)

    # ---- pass 2: normalize + LeakyReLU + residual add -----------------------
    out_flat = pl.pallas_call(
        _bn_act_res_kernel,
        out_shape=jax.ShapeDtypeStruct((C, WIDTH_T), x.dtype),
        grid=(n_cb, n_wt),
        in_specs=[
            pl.BlockSpec((CBLK, TW), lambda i, j: (i, j)),   # conv output
            pl.BlockSpec((CBLK, TW), lambda i, j: (i, j)),   # residual (f32)
            pl.BlockSpec((CBLK, 1), lambda i, j: (i, 0)),    # BN scale
            pl.BlockSpec((CBLK, 1), lambda i, j: (i, 0)),    # BN shift
        ],
        out_specs=pl.BlockSpec((CBLK, TW), lambda i, j: (i, j)),
        compiler_params=pltpu.CompilerParams(
            dimension_semantics=("parallel", "parallel"),
            vmem_limit_bytes=VMEM_LIMIT),
    )(y1, xres, scale2, shift2)

    # Restore NCHW.  (A lane-dense consumer could take out_flat directly and
    # skip this epilogue.)
    out = out_flat[:, :NLp].reshape(C, N, Hp, Wp)[:, :, PAD:PAD + H, PAD:PAD + W]
    return out.transpose(1, 0, 2, 3)


def residual_block_ref(x, weight, bias, gamma, beta, conv_dtype=jnp.float32):
    # Pure-JAX reference mirroring the PyTorch forward (training-mode BN).
    # `conv_dtype=jnp.bfloat16` rounds the conv inputs like the MXU path.
    xc = x.astype(conv_dtype).astype(jnp.float32)
    wc = weight.astype(conv_dtype).astype(jnp.float32)
    y = jax.lax.conv_general_dilated(
        xc, wc, window_strides=(1, 1), padding=((PAD, PAD), (PAD, PAD)),
        rhs_dilation=(DIL, DIL), dimension_numbers=("NCHW", "OIHW", "NCHW"),
        precision=jax.lax.Precision.HIGHEST)
    y = y + bias[None, :, None, None]
    mean = jnp.mean(y, axis=(0, 2, 3), keepdims=True)
    var = jnp.mean((y - mean) ** 2, axis=(0, 2, 3), keepdims=True)
    y = (y - mean) / jnp.sqrt(var + EPS)
    y = y * gamma[None, :, None, None] + beta[None, :, None, None]
    y = jnp.where(y >= 0, y, SLOPE * y)
    return x + y


if __name__ == "__main__":
    key = jax.random.PRNGKey(0)
    kx, kw, kb, kg, kbt = jax.random.split(key, 5)

    N, C, H, W = 2, 4, 16, 16
    x = jax.random.normal(kx, (N, C, H, W), dtype=jnp.float32)

    # Deterministic, torch-like init (kaiming-uniform-ish bounds).
    fan_in = C * K * K
    bound = 1.0 / (fan_in ** 0.5)
    weight = jax.random.uniform(kw, (C, C, K, K), jnp.float32, -bound, bound)
    bias = jax.random.uniform(kb, (C,), jnp.float32, -bound, bound)
    gamma = jnp.ones((C,), jnp.float32) + 0.1 * jax.random.normal(kg, (C,), jnp.float32)
    beta = 0.1 * jax.random.normal(kbt, (C,), jnp.float32)

    fwd = jax.jit(residual_block)
    out = jax.block_until_ready(fwd(x, weight, bias, gamma, beta))
    assert out.shape == x.shape and out.dtype == x.dtype

    # Precision-matched reference (conv inputs rounded to bf16, like the MXU).
    ref_bf16 = residual_block_ref(x, weight, bias, gamma, beta, jnp.bfloat16)
    err = float(jnp.max(jnp.abs(out - ref_bf16)))
    if err > 1e-2:
        raise AssertionError(f"max abs error vs bf16-matched reference: {err}")

    # Sanity check against the full-f32 reference (bf16 MXU rounding only).
    ref_f32 = residual_block_ref(x, weight, bias, gamma, beta, jnp.float32)
    err_f32 = float(jnp.max(jnp.abs(out - ref_f32)))
    if err_f32 > 5e-2:
        raise AssertionError(f"max abs error vs f32 reference: {err_f32}")

    print("KERNEL_OK")
</pallas_src>

<mosaic_0001>
module attributes {stable_mosaic.version = 11 : i64} {
  func.func @_conv_stats_kernel(%arg0: i32, %arg1: i32, %arg2: memref<1x4x768xf32, #tpu.memory_space<vmem>>, %arg3: memref<9x4x4xbf16, #tpu.memory_space<vmem>>, %arg4: memref<1x1x512xf32, #tpu.memory_space<vmem>>, %arg5: memref<4x512xf32, #tpu.memory_space<vmem>>, %arg6: memref<1x4x128xf32, #tpu.memory_space<vmem>>) attributes {dimension_semantics = [#tpu.dimension_semantics<parallel>, #tpu.dimension_semantics<parallel>], iteration_bounds = array<i64: 1, 2>, scalar_prefetch = 0 : i64, scratch_operands = 0 : i64, tpu.core_type = #tpu.core_type<tc>, window_params = [{transform_indices = @transform_0, window_bounds = array<i64: 1, 4, 768>}, {transform_indices = @transform_1, window_bounds = array<i64: 9, 4, 4>}, {transform_indices = @transform_2, window_bounds = array<i64: 1, 1, 512>}, {transform_indices = @transform_3, window_bounds = array<i64: 4, 512>}, {transform_indices = @transform_4, window_bounds = array<i64: 1, 4, 128>}]} {
    %c0 = arith.constant 0 : index
    %c0_0 = arith.constant 0 : index
    %c0_1 = arith.constant 0 : index
    %0 = vector.load %arg2[%c0, %c0_0, %c0_1] : memref<1x4x768xf32, #tpu.memory_space<vmem>>, vector<1x4x768xf32>
    %1 = vector.shape_cast %0 : vector<1x4x768xf32> to vector<4x768xf32>
    %2 = arith.truncf %1 : vector<4x768xf32> to vector<4x768xbf16>
    %cst = arith.constant 0.000000e+00 : f32
    %3 = vector.broadcast %cst : f32 to vector<4x512xf32>
    %c0_2 = arith.constant 0 : index
    %c0_3 = arith.constant 0 : index
    %c0_4 = arith.constant 0 : index
    %4 = vector.load %arg3[%c0_2, %c0_3, %c0_4] : memref<9x4x4xbf16, #tpu.memory_space<vmem>>, vector<1x4x4xbf16>
    %5 = vector.shape_cast %4 : vector<1x4x4xbf16> to vector<4x4xbf16>
    %6 = vector.extract_strided_slice %2 {offsets = [0, 59], sizes = [4, 512], strides = [1, 1]} : vector<4x768xbf16> to vector<4x512xbf16>
    %cst_5 = arith.constant dense<0.000000e+00> : vector<4x512xf32>
    %7 = tpu.matmul %5, %6, %cst_5 {dimension_numbers = #tpu.dot_dimension_numbers<[1], [0], [0], [1], [0, 0, 1, 1], [], []>} : vector<4x4xbf16>, vector<4x512xbf16>, vector<4x512xf32> -> vector<4x512xf32>
    %8 = arith.addf %3, %7 : vector<4x512xf32>
    %c1 = arith.constant 1 : index
    %c0_6 = arith.constant 0 : index
    %c0_7 = arith.constant 0 : index
    %9 = vector.load %arg3[%c1, %c0_6, %c0_7] : memref<9x4x4xbf16, #tpu.memory_space<vmem>>, vector<1x4x4xbf16>
    %10 = vector.shape_cast %9 : vector<1x4x4xbf16> to vector<4x4xbf16>
    %11 = vector.extract_strided_slice %2 {offsets = [0, 62], sizes = [4, 512], strides = [1, 1]} : vector<4x768xbf16> to vector<4x512xbf16>
    %cst_8 = arith.constant dense<0.000000e+00> : vector<4x512xf32>
    %12 = tpu.matmul %10, %11, %cst_8 {dimension_numbers = #tpu.dot_dimension_numbers<[1], [0], [0], [1], [0, 0, 1, 1], [], []>} : vector<4x4xbf16>, vector<4x512xbf16>, vector<4x512xf32> -> vector<4x512xf32>
    %13 = arith.addf %8, %12 : vector<4x512xf32>
    %c2 = arith.constant 2 : index
    %c0_9 = arith.constant 0 : index
    %c0_10 = arith.constant 0 : index
    %14 = vector.load %arg3[%c2, %c0_9, %c0_10] : memref<9x4x4xbf16, #tpu.memory_space<vmem>>, vector<1x4x4xbf16>
    %15 = vector.shape_cast %14 : vector<1x4x4xbf16> to vector<4x4xbf16>
    %16 = vector.extract_strided_slice %2 {offsets = [0, 65], sizes = [4, 512], strides = [1, 1]} : vector<4x768xbf16> to vector<4x512xbf16>
    %cst_11 = arith.constant dense<0.000000e+00> : vector<4x512xf32>
    %17 = tpu.matmul %15, %16, %cst_11 {dimension_numbers = #tpu.dot_dimension_numbers<[1], [0], [0], [1], [0, 0, 1, 1], [], []>} : vector<4x4xbf16>, vector<4x512xbf16>, vector<4x512xf32> -> vector<4x512xf32>
    %18 = arith.addf %13, %17 : vector<4x512xf32>
    %c3 = arith.constant 3 : index
    %c0_12 = arith.constant 0 : index
    %c0_13 = arith.constant 0 : index
    %19 = vector.load %arg3[%c3, %c0_12, %c0_13] : memref<9x4x4xbf16, #tpu.memory_space<vmem>>, vector<1x4x4xbf16>
    %20 = vector.shape_cast %19 : vector<1x4x4xbf16> to vector<4x4xbf16>
    %21 = vector.extract_strided_slice %2 {offsets = [0, 125], sizes = [4, 512], strides = [1, 1]} : vector<4x768xbf16> to vector<4x512xbf16>
    %cst_14 = arith.constant dense<0.000000e+00> : vector<4x512xf32>
    %22 = tpu.matmul %20, %21, %cst_14 {dimension_numbers = #tpu.dot_dimension_numbers<[1], [0], [0], [1], [0, 0, 1, 1], [], []>} : vector<4x4xbf16>, vector<4x512xbf16>, vector<4x512xf32> -> vector<4x512xf32>
    %23 = arith.addf %18, %22 : vector<4x512xf32>
    %c4 = arith.constant 4 : index
    %c0_15 = arith.constant 0 : index
    %c0_16 = arith.constant 0 : index
    %24 = vector.load %arg3[%c4, %c0_15, %c0_16] : memref<9x4x4xbf16, #tpu.memory_space<vmem>>, vector<1x4x4xbf16>
    %25 = vector.shape_cast %24 : vector<1x4x4xbf16> to vector<4x4xbf16>
    %26 = vector.extract_strided_slice %2 {offsets = [0, 128], sizes = [4, 512], strides = [1, 1]} : vector<4x768xbf16> to vector<4x512xbf16>
    %cst_17 = arith.constant dense<0.000000e+00> : vector<4x512xf32>
    %27 = tpu.matmul %25, %26, %cst_17 {dimension_numbers = #tpu.dot_dimension_numbers<[1], [0], [0], [1], [0, 0, 1, 1], [], []>} : vector<4x4xbf16>, vector<4x512xbf16>, vector<4x512xf32> -> vector<4x512xf32>
    %28 = arith.addf %23, %27 : vector<4x512xf32>
    %c5 = arith.constant 5 : index
    %c0_18 = arith.constant 0 : index
    %c0_19 = arith.constant 0 : index
    %29 = vector.load %arg3[%c5, %c0_18, %c0_19] : memref<9x4x4xbf16, #tpu.memory_space<vmem>>, vector<1x4x4xbf16>
    %30 = vector.shape_cast %29 : vector<1x4x4xbf16> to vector<4x4xbf16>
    %31 = vector.extract_strided_slice %2 {offsets = [0, 131], sizes = [4, 512], strides = [1, 1]} : vector<4x768xbf16> to vector<4x512xbf16>
    %cst_20 = arith.constant dense<0.000000e+00> : vector<4x512xf32>
    %32 = tpu.matmul %30, %31, %cst_20 {dimension_numbers = #tpu.dot_dimension_numbers<[1], [0], [0], [1], [0, 0, 1, 1], [], []>} : vector<4x4xbf16>, vector<4x512xbf16>, vector<4x512xf32> -> vector<4x512xf32>
    %33 = arith.addf %28, %32 : vector<4x512xf32>
    %c6 = arith.constant 6 : index
    %c0_21 = arith.constant 0 : index
    %c0_22 = arith.constant 0 : index
    %34 = vector.load %arg3[%c6, %c0_21, %c0_22] : memref<9x4x4xbf16, #tpu.memory_space<vmem>>, vector<1x4x4xbf16>
    %35 = vector.shape_cast %34 : vector<1x4x4xbf16> to vector<4x4xbf16>
    %36 = vector.extract_strided_slice %2 {offsets = [0, 191], sizes = [4, 512], strides = [1, 1]} : vector<4x768xbf16> to vector<4x512xbf16>
    %cst_23 = arith.constant dense<0.000000e+00> : vector<4x512xf32>
    %37 = tpu.matmul %35, %36, %cst_23 {dimension_numbers = #tpu.dot_dimension_numbers<[1], [0], [0], [1], [0, 0, 1, 1], [], []>} : vector<4x4xbf16>, vector<4x512xbf16>, vector<4x512xf32> -> vector<4x512xf32>
    %38 = arith.addf %33, %37 : vector<4x512xf32>
    %c7 = arith.constant 7 : index
    %c0_24 = arith.constant 0 : index
    %c0_25 = arith.constant 0 : index
    %39 = vector.load %arg3[%c7, %c0_24, %c0_25] : memref<9x4x4xbf16, #tpu.memory_space<vmem>>, vector<1x4x4xbf16>
    %40 = vector.shape_cast %39 : vector<1x4x4xbf16> to vector<4x4xbf16>
    %41 = vector.extract_strided_slice %2 {offsets = [0, 194], sizes = [4, 512], strides = [1, 1]} : vector<4x768xbf16> to vector<4x512xbf16>
    %cst_26 = arith.constant dense<0.000000e+00> : vector<4x512xf32>
    %42 = tpu.matmul %40, %41, %cst_26 {dimension_numbers = #tpu.dot_dimension_numbers<[1], [0], [0], [1], [0, 0, 1, 1], [], []>} : vector<4x4xbf16>, vector<4x512xbf16>, vector<4x512xf32> -> vector<4x512xf32>
    %43 = arith.addf %38, %42 : vector<4x512xf32>
    %c8 = arith.constant 8 : index
    %c0_27 = arith.constant 0 : index
    %c0_28 = arith.constant 0 : index
    %44 = vector.load %arg3[%c8, %c0_27, %c0_28] : memref<9x4x4xbf16, #tpu.memory_space<vmem>>, vector<1x4x4xbf16>
    %45 = vector.shape_cast %44 : vector<1x4x4xbf16> to vector<4x4xbf16>
    %46 = vector.extract_strided_slice %2 {offsets = [0, 197], sizes = [4, 512], strides = [1, 1]} : vector<4x768xbf16> to vector<4x512xbf16>
    %cst_29 = arith.constant dense<0.000000e+00> : vector<4x512xf32>
    %47 = tpu.matmul %45, %46, %cst_29 {dimension_numbers = #tpu.dot_dimension_numbers<[1], [0], [0], [1], [0, 0, 1, 1], [], []>} : vector<4x4xbf16>, vector<4x512xbf16>, vector<4x512xf32> -> vector<4x512xf32>
    %48 = arith.addf %43, %47 : vector<4x512xf32>
    %c0_30 = arith.constant 0 : index
    %c0_31 = arith.constant 0 : index
    %49 = vector.load %arg5[%c0_30, %c0_31] : memref<4x512xf32, #tpu.memory_space<vmem>>, vector<4x512xf32>
    tpu.vector_store %arg5[%c0_30, %c0_31], %48 {strides = array<i32>} : memref<4x512xf32, #tpu.memory_space<vmem>>, vector<4x512xf32>,
    %c0_32 = arith.constant 0 : index
    %c0_33 = arith.constant 0 : index
    %c0_34 = arith.constant 0 : index
    %50 = vector.load %arg4[%c0_32, %c0_33, %c0_34] : memref<1x1x512xf32, #tpu.memory_space<vmem>>, vector<1x1x512xf32>
    %51 = vector.shape_cast %50 : vector<1x1x512xf32> to vector<1x512xf32>
    %52 = vector.broadcast %51 : vector<1x512xf32> to vector<4x512xf32>
    %53 = arith.mulf %48, %52 : vector<4x512xf32>
    %cst_35 = arith.constant dense<0.000000e+00> : vector<4xf32>
    %54 = vector.multi_reduction <add>, %53, %cst_35 [1] : vector<4x512xf32> to vector<4xf32>
    %55 = vector.shape_cast %54 : vector<4xf32> to vector<4x1xf32>
    %56 = vector.shape_cast %55 : vector<4x1xf32> to vector<1x4x1xf32>
    %57 = arith.mulf %53, %48 : vector<4x512xf32>
    %cst_36 = arith.constant dense<0.000000e+00> : vector<4xf32>
    %58 = vector.multi_reduction <add>, %57, %cst_36 [1] : vector<4x512xf32> to vector<4xf32>
    %59 = vector.shape_cast %58 : vector<4xf32> to vector<4x1xf32>
    %60 = vector.shape_cast %59 : vector<4x1xf32> to vector<1x4x1xf32>
    %61 = tpu.iota {dimensions = array<i32: 2>} : vector<1x4x128xi32>
    %c0_i32 = arith.constant 0 : i32
    %62 = vector.broadcast %c0_i32 : i32 to vector<1x4x128xi32>
    %63 = arith.cmpi eq, %61, %62 : vector<1x4x128xi32>
    %cst_37 = arith.constant 0.000000e+00 : f32
    %64 = vector.shape_cast %56 : vector<1x4x1xf32> to vector<1x4x1xf32>
    %65 = vector.broadcast %64 : vector<1x4x1xf32> to vector<1x4x128xf32>
    %66 = vector.broadcast %cst_37 : f32 to vector<1x4x128xf32>
    %67 = arith.select %63, %65, %66 : vector<1x4x128xi1>, vector<1x4x128xf32>
    %c1_i32 = arith.constant 1 : i32
    %68 = vector.broadcast %c1_i32 : i32 to vector<1x4x128xi32>
    %69 = arith.cmpi eq, %61, %68 : vector<1x4x128xi32>
    %cst_38 = arith.constant 0.000000e+00 : f32
    %70 = vector.shape_cast %60 : vector<1x4x1xf32> to vector<1x4x1xf32>
    %71 = vector.broadcast %70 : vector<1x4x1xf32> to vector<1x4x128xf32>
    %72 = vector.broadcast %cst_38 : f32 to vector<1x4x128xf32>
    %73 = arith.select %69, %71, %72 : vector<1x4x128xi1>, vector<1x4x128xf32>
    %74 = arith.addf %67, %73 : vector<1x4x128xf32>
    %c0_39 = arith.constant 0 : index
    %c0_40 = arith.constant 0 : index
    %c0_41 = arith.constant 0 : index
    %75 = vector.load %arg6[%c0_39, %c0_40, %c0_41] : memref<1x4x128xf32, #tpu.memory_space<vmem>>, vector<1x4x128xf32>
    tpu.vector_store %arg6[%c0_39, %c0_40, %c0_41], %74 {strides = array<i32>} : memref<1x4x128xf32, #tpu.memory_space<vmem>>, vector<1x4x128xf32>,
    return
  }
  func.func @transform_0(%arg0: i32, %arg1: i32) -> (i32, i32, i32) {
    %c0_i32 = arith.constant 0 : i32
    %c0_i32_0 = arith.constant 0 : i32
    %c0_i32_1 = arith.constant 0 : i32
    return %arg1, %c0_i32, %c0_i32_0 : i32, i32, i32
  }
  func.func @transform_1(%arg0: i32, %arg1: i32) -> (i32, i32, i32) {
    %c0_i32 = arith.constant 0 : i32
    %c0_i32_0 = arith.constant 0 : i32
    %c0_i32_1 = arith.constant 0 : i32
    return %c0_i32, %arg0, %c0_i32_0 : i32, i32, i32
  }
  func.func @transform_2(%arg0: i32, %arg1: i32) -> (i32, i32, i32) {
    %c0_i32 = arith.constant 0 : i32
    %c0_i32_0 = arith.constant 0 : i32
    %c0_i32_1 = arith.constant 0 : i32
    return %arg1, %c0_i32, %c0_i32_0 : i32, i32, i32
  }
  func.func @transform_3(%arg0: i32, %arg1: i32) -> (i32, i32) {
    %c0_i32 = arith.constant 0 : i32
    return %arg0, %arg1 : i32, i32
  }
  func.func @transform_4(%arg0: i32, %arg1: i32) -> (i32, i32, i32) {
    %c0_i32 = arith.constant 0 : i32
    %c0_i32_0 = arith.constant 0 : i32
    return %arg1, %arg0, %c0_i32 : i32, i32, i32
  }
}

module attributes {stable_mosaic.version = 11 : i64} {
  func.func @_bn_act_res_kernel(%arg0: i32, %arg1: i32, %arg2: memref<4x512xf32, #tpu.memory_space<vmem>>, %arg3: memref<4x512xf32, #tpu.memory_space<vmem>>, %arg4: memref<4x1xf32, #tpu.memory_space<vmem>>, %arg5: memref<4x1xf32, #tpu.memory_space<vmem>>, %arg6: memref<4x512xf32, #tpu.memory_space<vmem>>) attributes {dimension_semantics = [#tpu.dimension_semantics<parallel>, #tpu.dimension_semantics<parallel>], iteration_bounds = array<i64: 1, 2>, scalar_prefetch = 0 : i64, scratch_operands = 0 : i64, tpu.core_type = #tpu.core_type<tc>, window_params = [{transform_indices = @transform_0, window_bounds = array<i64: 4, 512>}, {transform_indices = @transform_1, window_bounds = array<i64: 4, 512>}, {transform_indices = @transform_2, window_bounds = array<i64: 4, 1>}, {transform_indices = @transform_3, window_bounds = array<i64: 4, 1>}, {transform_indices = @transform_4, window_bounds = array<i64: 4, 512>}]} {
    %c0 = arith.constant 0 : index
    %c0_0 = arith.constant 0 : index
    %0 = vector.load %arg2[%c0, %c0_0] : memref<4x512xf32, #tpu.memory_space<vmem>>, vector<4x512xf32>
    %c0_1 = arith.constant 0 : index
    %c0_2 = arith.constant 0 : index
    %1 = vector.load %arg4[%c0_1, %c0_2] : memref<4x1xf32, #tpu.memory_space<vmem>>, vector<4x1xf32>
    %2 = vector.broadcast %1 : vector<4x1xf32> to vector<4x512xf32>
    %3 = arith.mulf %0, %2 : vector<4x512xf32>
    %c0_3 = arith.constant 0 : index
    %c0_4 = arith.constant 0 : index
    %4 = vector.load %arg5[%c0_3, %c0_4] : memref<4x1xf32, #tpu.memory_space<vmem>>, vector<4x1xf32>
    %5 = vector.broadcast %4 : vector<4x1xf32> to vector<4x512xf32>
    %6 = arith.addf %3, %5 : vector<4x512xf32>
    %cst = arith.constant 0.000000e+00 : f32
    %7 = vector.broadcast %cst : f32 to vector<4x512xf32>
    %8 = arith.cmpf oge, %6, %7 : vector<4x512xf32>
    %cst_5 = arith.constant 0.00999999977 : f32
    %9 = vector.broadcast %cst_5 : f32 to vector<4x512xf32>
    %10 = arith.mulf %9, %6 : vector<4x512xf32>
    %11 = arith.select %8, %6, %10 : vector<4x512xi1>, vector<4x512xf32>
    %c0_6 = arith.constant 0 : index
    %c0_7 = arith.constant 0 : index
    %12 = vector.load %arg3[%c0_6, %c0_7] : memref<4x512xf32, #tpu.memory_space<vmem>>, vector<4x512xf32>
    %13 = arith.addf %12, %11 : vector<4x512xf32>
    %c0_8 = arith.constant 0 : index
    %c0_9 = arith.constant 0 : index
    %14 = vector.load %arg6[%c0_8, %c0_9] : memref<4x512xf32, #tpu.memory_space<vmem>>, vector<4x512xf32>
    tpu.vector_store %arg6[%c0_8, %c0_9], %13 {strides = array<i32>} : memref<4x512xf32, #tpu.memory_space<vmem>>, vector<4x512xf32>,
    return
  }
  func.func @transform_0(%arg0: i32, %arg1: i32) -> (i32, i32) {
    %c0_i32 = arith.constant 0 : i32
    return %arg0, %arg1 : i32, i32
  }
  func.func @transform_1(%arg0: i32, %arg1: i32) -> (i32, i32) {
    %c0_i32 = arith.constant 0 : i32
    return %arg0, %arg1 : i32, i32
  }
  func.func @transform_2(%arg0: i32, %arg1: i32) -> (i32, i32) {
    %c0_i32 = arith.constant 0 : i32
    %c0_i32_0 = arith.constant 0 : i32
    return %arg0, %c0_i32 : i32, i32
  }
  func.func @transform_3(%arg0: i32, %arg1: i32) -> (i32, i32) {
    %c0_i32 = arith.constant 0 : i32
    %c0_i32_0 = arith.constant 0 : i32
    return %arg0, %c0_i32 : i32, i32
  }
  func.func @transform_4(%arg0: i32, %arg1: i32) -> (i32, i32) {
    %c0_i32 = arith.constant 0 : i32
    return %arg0, %arg1 : i32, i32
  }
}

</mosaic_0001>

<llo_original>
// kernel: residual_block.3
$region0: #{residual_block.3}
  #allocation0 [shape = 'u32[]', space=smem, size = 0x4, offset = 0x4, fixed_abs, tag = 'smem constant byte address 0x4 - core index']
  #allocation1 [shape = 'u32[72,128]{1,0:T(1,128)}', space=vmem, size = 0x9000, scoped, tag = 'internal scratch']
  %s0 = inlined_call_operand.vmem [shape: f32[4,1024], index: 0, kind: input, shape index: {}]
  %s1 = inlined_call_operand.vmem [shape: f32[4,1024], index: 1, kind: input, shape index: {}]
  %s2 = inlined_call_operand.vmem [shape: f32[4,1], index: 2, kind: input, shape index: {}]
  %s3 = inlined_call_operand.vmem [shape: f32[4,1], index: 3, kind: input, shape index: {}]
  %s4 = inlined_call_operand.vmem [shape: f32[4,1024], index: 4, kind: output, shape index: {}]
  %s5 = sld [smem:[#allocation0]]
  $region49: #{residual_block.3} parent=0
    _
  %s7 = ssub.s32 1, %s5
  %s8 = scalar_select 0, %s7, %s5
  loop: start=0, step=1, limit=4
  $region2: #{residual_block.3} parent=0 // loop_pre_header
    _
  $region3: #{residual_block.3} parent=0 // loop_header
    %s10 = sphi 0, %s14
    %p11 = scmp.ge.s32.totalorder %s10, 4
    %s17 = sphi 0, %s29
    %s18 = sphi 0, %s25
    %s19 = sphi 0, %s17
    %s20 = sphi 0, %s18
    %s21 = sphi 0, %s19
    %s22 = sphi 0, %s20
    %s34 = sphi 0, %s36
    %s37 = sphi 0, %s34
    %s38 = sphi 0, %s37
    %s54 = sphi 0, %s38
    %s62 = sphi 0, %s64
    %s65 = sphi 0, %s62
    %s66 = sphi 0, %s65
    %s82 = sphi 0, %s66
    %s88 = sphi 0, %s90
    %s91 = sphi 0, %s88
    %s92 = sphi 0, %s91
    %s108 = sphi 0, %s92
    %s114 = sphi 0, %s116
    %s117 = sphi 0, %s114
    %s118 = sphi 0, %s117
    %s134 = sphi 0, %s118
    %s142 = sphi 0, %s144
    %s145 = sphi 0, %s142
    %s146 = sphi 0, %s145
    %s162 = sphi 0, %s146
  $region4: #{residual_block.3} parent=0 // loop_header_branch
    %13 = sbr.rel (%p11) target = $region8
  $region5: #{residual_block.3} parent=0 // loop_body
    %s15 = ssub.s32 %s10, 1
    %s16 = ssub.s32 %s10, 2
    %s23 = sadd.s32 1, %s18
    %p24 = scmp.ge.s32.totalorder %s23, 2
    %s25 = scalar_select %p24, 0, %s23
    %s26 = sadd.s32 1, %s17
    %s27 = scalar_select %p24, %s26, %s17
    %p28 = scmp.ge.s32.totalorder %s27, 1
    %s29 = scalar_select %p28, 0, %s27
    %s30 = ssub.s32 %s17, %s29
    %s31 = ssub.s32 %s18, %s25
    %s32 = sor.u32 %s30, %s31
    %p33 = scmp.eq.s32.totalorder %s32, 0
    %s35 = sadd.s32 %s34, 1
    %s36 = scalar_select %p33, %s34, %s35
    %p39 = pneg %p33
    %p40 = scmp.eq.s32.totalorder %s10, 1
    %p41 = por %p39, %p40
    %p42 = scmp.ne.s32.totalorder %s34, %s37
    %p43 = scmp.eq.s32.totalorder %s10, 0
    %p44 = por %p42, %p43
    %p45 = scmp.ne.s32.totalorder %s34, %s37
    %p46 = scmp.eq.s32.totalorder %s15, 1
    %p47 = por %p45, %p46
    %p48 = scmp.ne.s32.totalorder %s37, %s38
    %p49 = scmp.eq.s32.totalorder %s15, 0
    %p50 = por %p48, %p49
    %p51 = scmp.ne.s32.totalorder %s37, %s38
    %p52 = scmp.eq.s32.totalorder %s16, 1
    %p53 = por %p51, %p52
    %p55 = scmp.ne.s32.totalorder %s38, %s54
    %p56 = scmp.eq.s32.totalorder %s16, 0
    %p57 = por %p55, %p56
    %s58 = ssub.s32 %s17, %s29
    %s59 = ssub.s32 %s18, %s25
    %s60 = sor.u32 %s58, %s59
    %p61 = scmp.eq.s32.totalorder %s60, 0
    %s63 = sadd.s32 %s62, 1
    %s64 = scalar_select %p61, %s62, %s63
    %p67 = pneg %p61
    %p68 = scmp.eq.s32.totalorder %s10, 1
    %p69 = por %p67, %p68
    %p70 = scmp.ne.s32.totalorder %s62, %s65
    %p71 = scmp.eq.s32.totalorder %s10, 0
    %p72 = por %p70, %p71
    %p73 = scmp.ne.s32.totalorder %s62, %s65
    %p74 = scmp.eq.s32.totalorder %s15, 1
    %p75 = por %p73, %p74
    %p76 = scmp.ne.s32.totalorder %s65, %s66
    %p77 = scmp.eq.s32.totalorder %s15, 0
    %p78 = por %p76, %p77
    %p79 = scmp.ne.s32.totalorder %s65, %s66
    %p80 = scmp.eq.s32.totalorder %s16, 1
    %p81 = por %p79, %p80
    %p83 = scmp.ne.s32.totalorder %s66, %s82
    %p84 = scmp.eq.s32.totalorder %s16, 0
    %p85 = por %p83, %p84
    %s86 = ssub.s32 %s17, %s29
    %p87 = scmp.eq.s32.totalorder %s86, 0
    %s89 = sadd.s32 %s88, 1
    %s90 = scalar_select %p87, %s88, %s89
    %p93 = pneg %p87
    %p94 = scmp.eq.s32.totalorder %s10, 1
    %p95 = por %p93, %p94
    %p96 = scmp.ne.s32.totalorder %s88, %s91
    %p97 = scmp.eq.s32.totalorder %s10, 0
    %p98 = por %p96, %p97
    %p99 = scmp.ne.s32.totalorder %s88, %s91
    %p100 = scmp.eq.s32.totalorder %s15, 1
    %p101 = por %p99, %p100
    %p102 = scmp.ne.s32.totalorder %s91, %s92
    %p103 = scmp.eq.s32.totalorder %s15, 0
    %p104 = por %p102, %p103
    %p105 = scmp.ne.s32.totalorder %s91, %s92
    %p106 = scmp.eq.s32.totalorder %s16, 1
    %p107 = por %p105, %p106
    %p109 = scmp.ne.s32.totalorder %s92, %s108
    %p110 = scmp.eq.s32.totalorder %s16, 0
    %p111 = por %p109, %p110
    %s112 = ssub.s32 %s17, %s29
    %p113 = scmp.eq.s32.totalorder %s112, 0
    %s115 = sadd.s32 %s114, 1
    %s116 = scalar_select %p113, %s114, %s115
    %p119 = pneg %p113
    %p120 = scmp.eq.s32.totalorder %s10, 1
    %p121 = por %p119, %p120
    %p122 = scmp.ne.s32.totalorder %s114, %s117
    %p123 = scmp.eq.s32.totalorder %s10, 0
    %p124 = por %p122, %p123
    %p125 = scmp.ne.s32.totalorder %s114, %s117
    %p126 = scmp.eq.s32.totalorder %s15, 1
    %p127 = por %p125, %p126
    %p128 = scmp.ne.s32.totalorder %s117, %s118
    %p129 = scmp.eq.s32.totalorder %s15, 0
    %p130 = por %p128, %p129
    %p131 = scmp.ne.s32.totalorder %s117, %s118
    %p132 = scmp.eq.s32.totalorder %s16, 1
    %p133 = por %p131, %p132
    %p135 = scmp.ne.s32.totalorder %s118, %s134
    %p136 = scmp.eq.s32.totalorder %s16, 0
    %p137 = por %p135, %p136
    %s138 = ssub.s32 %s17, %s29
    %s139 = ssub.s32 %s18, %s25
    %s140 = sor.u32 %s138, %s139
    %p141 = scmp.eq.s32.totalorder %s140, 0
    %s143 = sadd.s32 %s142, 1
    %s144 = scalar_select %p141, %s142, %s143
    %p147 = pneg %p141
    %p148 = scmp.eq.s32.totalorder %s10, 1
    %p149 = por %p147, %p148
    %p150 = scmp.ne.s32.totalorder %s142, %s145
    %p151 = scmp.eq.s32.totalorder %s10, 0
    %p152 = por %p150, %p151
    %p153 = scmp.ne.s32.totalorder %s142, %s145
    %p154 = scmp.eq.s32.totalorder %s15, 1
    %p155 = por %p153, %p154
    %p156 = scmp.ne.s32.totalorder %s145, %s146
    %p157 = scmp.eq.s32.totalorder %s15, 0
    %p158 = por %p156, %p157
    %p159 = scmp.ne.s32.totalorder %s145, %s146
    %p160 = scmp.eq.s32.totalorder %s16, 1
    %p161 = por %p159, %p160
    %p163 = scmp.ne.s32.totalorder %s146, %s162
    %p164 = scmp.eq.s32.totalorder %s16, 0
    %p165 = por %p163, %p164
    %p166 = scmp.le.s32.totalorder 1, %s10
    %p167 = scmp.lt.s32.totalorder %s10, 3
    %p168 = pnand %p166, %p167
    %p169 = pneg %p168
    // Predicated region
    $region9: #{residual_block.3} parent=5 // pred_check
      _
    $region10: #{residual_block.3} parent=5 // pred_check_branch
      %171 = sbr.rel (%p168) target = $region12
    $region11: #{residual_block.3} parent=5 // pred_region
      %s172 = ssub.s32 %s10, 1
      // Predicated region
      $region13: #{residual_block.3} parent=11 // pred_check
        %p173 = pneg %p104
      $region14: #{residual_block.3} parent=11 // pred_check_branch
        %175 = sbr.rel (%p173) target = $region16
      $region15: #{residual_block.3} parent=11 // pred_region
        %p176 = scmp.lt.s32.totalorder %s19, 0
        %s177 = scalar_select %p176, %s19, 0
        %s178 = smul.addr %s177, 4
        %s179 = scalar_lea.vmem %s2, %s178
      $region16: #{residual_block.3} parent=11 // pred_fallthru
        _
      // Predicated region
      $region17: #{residual_block.3} parent=11 // pred_check
        %p180 = pneg %p130
      $region18: #{residual_block.3} parent=11 // pred_check_branch
        %182 = sbr.rel (%p180) target = $region20
      $region19: #{residual_block.3} parent=11 // pred_region
        %p183 = scmp.lt.s32.totalorder %s19, 0
        %s184 = scalar_select %p183, %s19, 0
        %s185 = smul.addr %s184, 4
        %s186 = scalar_lea.vmem %s3, %s185
      $region20: #{residual_block.3} parent=11 // pred_fallthru
        _
    $region12: #{residual_block.3} parent=5 // pred_fallthru
      _
    %p187 = scmp.lt.s32.totalorder %s10, 2
    // Predicated region
    $region21: #{residual_block.3} parent=5 // pred_check
      %p188 = pneg %p187
    $region22: #{residual_block.3} parent=5 // pred_check_branch
      %190 = sbr.rel (%p188) target = $region24
    $region23: #{residual_block.3} parent=5 // pred_region
      // Predicated region
      $region25: #{residual_block.3} parent=23 // pred_check
        %p191 = pneg %p44
      $region26: #{residual_block.3} parent=23 // pred_check_branch
        %193 = sbr.rel (%p191) target = $region28
      $region27: #{residual_block.3} parent=23 // pred_region
        %s194 = smul.u32 4, %s18
        %p195 = scmp.lt.s32.totalorder %s17, 0
        %s196 = scalar_select %p195, %s17, 0
        %p197 = scmp.lt.s32.totalorder %s194, 7
        %s198 = scalar_select %p197, %s194, 7
        %s199 = smul.addr %s196, 8
        %s200 = sadd.s32 %s198, %s199
        %s201 = smul.addr %s200, 4
        %s202 = scalar_lea.vmem %s0, %s201
        %s203 = smul.u32 4, %s18
      $region28: #{residual_block.3} parent=23 // pred_fallthru
        _
      // Predicated region
      $region29: #{residual_block.3} parent=23 // pred_check
        %p204 = pneg %p72
      $region30: #{residual_block.3} parent=23 // pred_check_branch
        %206 = sbr.rel (%p204) target = $region32
      $region31: #{residual_block.3} parent=23 // pred_region
        %s207 = smul.u32 4, %s18
        %p208 = scmp.lt.s32.totalorder %s17, 0
        %s209 = scalar_select %p208, %s17, 0
        %p210 = scmp.lt.s32.totalorder %s207, 7
        %s211 = scalar_select %p210, %s207, 7
        %s212 = smul.addr %s209, 8
        %s213 = sadd.s32 %s211, %s212
        %s214 = smul.addr %s213, 4
        %s215 = scalar_lea.vmem %s1, %s214
        %s216 = smul.u32 4, %s18
      $region32: #{residual_block.3} parent=23 // pred_fallthru
        _
    $region24: #{residual_block.3} parent=5 // pred_fallthru
      _
    %p217 = scmp.le.s32.totalorder 1, %s10
    %p218 = scmp.lt.s32.totalorder %s10, 3
    %p219 = pnand %p217, %p218
    %p220 = pneg %p219
    // Predicated region
    $region33: #{residual_block.3} parent=5 // pred_check
      _
    $region34: #{residual_block.3} parent=5 // pred_check_branch
      %222 = sbr.rel (%p219) target = $region36
    $region35: #{residual_block.3} parent=5 // pred_region
      %s223 = ssub.s32 %s10, 1
      %s224 = smul.u32 4, %s20
      %p225 = scmp.lt.s32.totalorder %s19, 0
      %s226 = scalar_select %p225, %s19, 0
      %p227 = scmp.lt.s32.totalorder %s224, 7
      %s228 = scalar_select %p227, %s224, 7
      %s229 = smul.addr %s226, 8
      %s230 = sadd.s32 %s228, %s229
      %s231 = smul.addr %s230, 4
      %s232 = scalar_lea.vmem %s0, %s231
      %p233 = pneg %p50
      %p234 = pneg %p47
      %s235 = smul.u32 4, %s20
      %p236 = scmp.lt.s32.totalorder %s19, 0
      %s237 = scalar_select %p236, %s19, 0
      %p238 = scmp.lt.s32.totalorder %s235, 7
      %s239 = scalar_select %p238, %s235, 7
      %s240 = smul.addr %s237, 8
      %s241 = sadd.s32 %s239, %s240
      %s242 = smul.addr %s241, 4
      %s243 = scalar_lea.vmem %s1, %s242
      %p244 = pneg %p78
      %p245 = pneg %p75
      %p246 = scmp.lt.s32.totalorder %s19, 0
      %s247 = scalar_select %p246, %s19, 0
      %s248 = smul.addr %s247, 4
      %s249 = scalar_lea.vmem %s2, %s248
      %p250 = pneg %p104
      %p251 = pneg %p101
      %p252 = scmp.lt.s32.totalorder %s19, 0
      %s253 = scalar_select %p252, %s19, 0
      %s254 = smul.addr %s253, 4
      %s255 = scalar_lea.vmem %s3, %s254
      %p256 = pneg %p130
      %p257 = pneg %p127
      %p258 = pneg %p158
      %p259 = pneg %p155
      %s260 = smul.u32 4, %s20
      %p261 = scmp.lt.s32.totalorder %s19, 0
      %s262 = scalar_select %p261, %s19, 0
      %p263 = scmp.lt.s32.totalorder %s260, 7
      %s264 = scalar_select %p263, %s260, 7
      %s265 = smul.addr %s262, 8
      %s266 = sadd.s32 %s264, %s265
      %s267 = smul.addr %s266, 4
      %s268 = scalar_lea.vmem %s4, %s267
      %s269 = smul.u32 4, %s20
      %p270 = scmp.lt.s32.totalorder %s19, 0
      %s271 = scalar_select %p270, %s19, 0
      %p272 = scmp.lt.s32.totalorder %s269, 7
      %s273 = scalar_select %p272, %s269, 7
      %s274 = smul.addr %s271, 8
      %s275 = sadd.s32 %s273, %s274
      %s276 = smul.addr %s275, 4
      %s277 = scalar_lea.vmem %s0, %s276
      %s278 = smul.u32 4, %s20
      %s279 = smul.u32 4, %s20
      %p280 = scmp.lt.s32.totalorder %s19, 0
      %s281 = scalar_select %p280, %s19, 0
      %p282 = scmp.lt.s32.totalorder %s279, 7
      %s283 = scalar_select %p282, %s279, 7
      %s284 = smul.addr %s281, 8
      %s285 = sadd.s32 %s283, %s284
      %s286 = smul.addr %s285, 4
      %s287 = scalar_lea.vmem %s1, %s286
      %s288 = smul.u32 4, %s20
      %p289 = scmp.lt.s32.totalorder %s19, 0
      %s290 = scalar_select %p289, %s19, 0
      %s291 = smul.addr %s290, 4
      %s292 = scalar_lea.vmem %s2, %s291
      %p293 = scmp.lt.s32.totalorder %s19, 0
      %s294 = scalar_select %p293, %s19, 0
      %s295 = smul.addr %s294, 4
      %s296 = scalar_lea.vmem %s3, %s295
      %s297 = smul.u32 4, %s20
      %p298 = scmp.lt.s32.totalorder %s19, 0
      %s299 = scalar_select %p298, %s19, 0
      %p300 = scmp.lt.s32.totalorder %s297, 7
      %s301 = scalar_select %p300, %s297, 7
      %s302 = smul.addr %s299, 8
      %s303 = sadd.s32 %s301, %s302
      %s304 = smul.addr %s303, 4
      %s305 = scalar_lea.vmem %s4, %s304
      %s306 = smul.u32 4, %s20
      %v307 = vld [vmem:[%s277] sm:$0xff]
      %v308 = vld [vmem:[%s277 + $0x8] sm:$0xff]
      %v309 = vld [vmem:[%s292] sm:$0xf]
      %311 = vset.pattern.permute.xlu0 0
      %312 = vperm.xlu0 %311, %v309
      %v313 = vpop.permute.xlu0 %312
      %v315 = vunpack.c.l.s4 839922192
      %v316 = vunpack.c.0.s8 %v315
      %v317 = vperm.slane %v313, %v316
      %v319 = vmul.f32 %v307, %v317
      %v320 = vmul.f32 %v308, %v317
      %v321 = vld [vmem:[%s296] sm:$0xf]
      %323 = vset.pattern.permute.xlu0 0
      %324 = vperm.xlu0 %323, %v321
      %v325 = vpop.permute.xlu0 %324
      %v327 = vunpack.c.l.s4 839922192
      %v328 = vunpack.c.0.s8 %v327
      %v329 = vperm.slane %v325, %v328
      %v331 = vadd.f32 %v319, %v329
      %v332 = vadd.f32 %v320, %v329
      %vm333 = vcmp.ge.f32.partialorder %v331, 0.0
      %vm334 = vcmp.ge.f32.partialorder %v332, 0.0
      %v335 = vmul.f32 %v331, 0.01
      %v336 = vmul.f32 %v332, 0.01
      %v337 = vsel %vm333, %v331, %v335
      %v338 = vsel %vm334, %v332, %v336
      %v339 = vld [vmem:[%s287] sm:$0xff]
      %v340 = vld [vmem:[%s287 + $0x8] sm:$0xff]
      %v341 = vadd.f32 %v339, %v337
      %v342 = vadd.f32 %v340, %v338
      %343 = vst [vmem:[%s305] sm:$0xff] %v341
      %344 = vst [vmem:[%s305 + $0x8] sm:$0xff] %v342
      %s345 = smul.u32 4, %s20
      %p346 = scmp.lt.s32.totalorder %s19, 0
      %s347 = scalar_select %p346, %s19, 0
      %p348 = scmp.lt.s32.totalorder %s345, 7
      %s349 = scalar_select %p348, %s345, 7
      %s350 = smul.addr %s347, 8
      %s351 = sadd.s32 %s349, %s350
      %s352 = smul.addr %s351, 4
      %s353 = scalar_lea.vmem %s4, %s352
      // Predicated region
      $region37: #{residual_block.3} parent=35 // pred_check
        %p354 = pneg %p155
      $region38: #{residual_block.3} parent=35 // pred_check_branch
        %356 = sbr.rel (%p354) target = $region40
      $region39: #{residual_block.3} parent=35 // pred_region
        %s357 = smul.u32 4, %s20
      $region40: #{residual_block.3} parent=35 // pred_fallthru
        _
    $region36: #{residual_block.3} parent=5 // pred_fallthru
      _
    %p358 = scmp.le.s32.totalorder 2, %s10
    // Predicated region
    $region41: #{residual_block.3} parent=5 // pred_check
      %p359 = pneg %p358
    $region42: #{residual_block.3} parent=5 // pred_check_branch
      %361 = sbr.rel (%p359) target = $region44
    $region43: #{residual_block.3} parent=5 // pred_region
      %s362 = ssub.s32 %s10, 2
      // Predicated region
      $region45: #{residual_block.3} parent=43 // pred_check
        %p363 = pneg %p161
      $region46: #{residual_block.3} parent=43 // pred_check_branch
        %365 = sbr.rel (%p363) target = $region48
      $region47: #{residual_block.3} parent=43 // pred_region
        %s366 = smul.u32 4, %s22
        %p367 = scmp.lt.s32.totalorder %s21, 0
        %s368 = scalar_select %p367, %s21, 0
        %p369 = scmp.lt.s32.totalorder %s366, 7
        %s370 = scalar_select %p369, %s366, 7
        %s371 = smul.addr %s368, 8
        %s372 = sadd.s32 %s370, %s371
        %s373 = smul.addr %s372, 4
        %s374 = scalar_lea.vmem %s4, %s373
      $region48: #{residual_block.3} parent=43 // pred_fallthru
        _
    $region44: #{residual_block.3} parent=5 // pred_fallthru
      _
  $region6: #{residual_block.3} parent=0 // loop_footer
    %s14 = sadd.s32 1, %s10
  $region7: #{residual_block.3} parent=0 // loop_footer_branch
    %9 = sbr.rel target = $region3
  $region8: #{residual_block.3} parent=0 // loop_exit
    _

// kernel: residual_block.2
$region0: #{residual_block.2}
  #allocation0 [shape = 'u32[]', space=smem, size = 0x4, offset = 0x4, fixed_abs, tag = 'smem constant byte address 0x4 - core index']
  #allocation1 [shape = 'u32[72,128]{1,0:T(1,128)}', space=vmem, size = 0x9000, scoped, tag = 'internal scratch']
  %s0 = inlined_call_operand.vmem [shape: f32[2,4,768], index: 0, kind: input, shape index: {}]
  %s1 = inlined_call_operand.vmem [shape: bf16[9,4,4], index: 1, kind: input, shape index: {}]
  %s2 = inlined_call_operand.vmem [shape: f32[2,1,512], index: 2, kind: input, shape index: {}]
  %s3 = inlined_call_operand.vmem [shape: f32[4,1024], index: 3, kind: output, shape index: {0}]
  %s4 = inlined_call_operand.vmem [shape: f32[2,4,128], index: 4, kind: output, shape index: {1}]
  %5 = xla_tuple %s3, %s4
  %s6 = sld [smem:[#allocation0]]
  $region53: #{residual_block.2} parent=0
    _
  %s8 = ssub.s32 1, %s6
  %s9 = scalar_select 0, %s8, %s6
  loop: start=0, step=1, limit=4
  $region2: #{residual_block.2} parent=0 // loop_pre_header
    _
  $region3: #{residual_block.2} parent=0 // loop_header
    %s11 = sphi 0, %s15
    %p12 = scmp.ge.s32.totalorder %s11, 4
    %s18 = sphi 0, %s30
    %s19 = sphi 0, %s26
    %s20 = sphi 0, %s18
    %s21 = sphi 0, %s19
    %s22 = sphi 0, %s20
    %s23 = sphi 0, %s21
    %s33 = sphi 0, %s35
    %s36 = sphi 0, %s33
    %s37 = sphi 0, %s36
    %s53 = sphi 0, %s37
    %s59 = sphi 0, %s61
    %s62 = sphi 0, %s59
    %s63 = sphi 0, %s62
    %s79 = sphi 0, %s63
    %s85 = sphi 0, %s87
    %s88 = sphi 0, %s85
    %s89 = sphi 0, %s88
    %s105 = sphi 0, %s89
    %s113 = sphi 0, %s115
    %s116 = sphi 0, %s113
    %s117 = sphi 0, %s116
    %s133 = sphi 0, %s117
    %s141 = sphi 0, %s143
    %s144 = sphi 0, %s141
    %s145 = sphi 0, %s144
    %s161 = sphi 0, %s145
  $region4: #{residual_block.2} parent=0 // loop_header_branch
    %14 = sbr.rel (%p12) target = $region8
  $region5: #{residual_block.2} parent=0 // loop_body
    %s16 = ssub.s32 %s11, 1
    %s17 = ssub.s32 %s11, 2
    %s24 = sadd.s32 1, %s19
    %p25 = scmp.ge.s32.totalorder %s24, 2
    %s26 = scalar_select %p25, 0, %s24
    %s27 = sadd.s32 1, %s18
    %s28 = scalar_select %p25, %s27, %s18
    %p29 = scmp.ge.s32.totalorder %s28, 1
    %s30 = scalar_select %p29, 0, %s28
    %s31 = ssub.s32 %s19, %s26
    %p32 = scmp.eq.s32.totalorder %s31, 0
    %s34 = sadd.s32 %s33, 1
    %s35 = scalar_select %p32, %s33, %s34
    %p38 = pneg %p32
    %p39 = scmp.eq.s32.totalorder %s11, 1
    %p40 = por %p38, %p39
    %p41 = scmp.ne.s32.totalorder %s33, %s36
    %p42 = scmp.eq.s32.totalorder %s11, 0
    %p43 = por %p41, %p42
    %p44 = scmp.ne.s32.totalorder %s33, %s36
    %p45 = scmp.eq.s32.totalorder %s16, 1
    %p46 = por %p44, %p45
    %p47 = scmp.ne.s32.totalorder %s36, %s37
    %p48 = scmp.eq.s32.totalorder %s16, 0
    %p49 = por %p47, %p48
    %p50 = scmp.ne.s32.totalorder %s36, %s37
    %p51 = scmp.eq.s32.totalorder %s17, 1
    %p52 = por %p50, %p51
    %p54 = scmp.ne.s32.totalorder %s37, %s53
    %p55 = scmp.eq.s32.totalorder %s17, 0
    %p56 = por %p54, %p55
    %s57 = ssub.s32 %s18, %s30
    %p58 = scmp.eq.s32.totalorder %s57, 0
    %s60 = sadd.s32 %s59, 1
    %s61 = scalar_select %p58, %s59, %s60
    %p64 = pneg %p58
    %p65 = scmp.eq.s32.totalorder %s11, 1
    %p66 = por %p64, %p65
    %p67 = scmp.ne.s32.totalorder %s59, %s62
    %p68 = scmp.eq.s32.totalorder %s11, 0
    %p69 = por %p67, %p68
    %p70 = scmp.ne.s32.totalorder %s59, %s62
    %p71 = scmp.eq.s32.totalorder %s16, 1
    %p72 = por %p70, %p71
    %p73 = scmp.ne.s32.totalorder %s62, %s63
    %p74 = scmp.eq.s32.totalorder %s16, 0
    %p75 = por %p73, %p74
    %p76 = scmp.ne.s32.totalorder %s62, %s63
    %p77 = scmp.eq.s32.totalorder %s17, 1
    %p78 = por %p76, %p77
    %p80 = scmp.ne.s32.totalorder %s63, %s79
    %p81 = scmp.eq.s32.totalorder %s17, 0
    %p82 = por %p80, %p81
    %s83 = ssub.s32 %s19, %s26
    %p84 = scmp.eq.s32.totalorder %s83, 0
    %s86 = sadd.s32 %s85, 1
    %s87 = scalar_select %p84, %s85, %s86
    %p90 = pneg %p84
    %p91 = scmp.eq.s32.totalorder %s11, 1
    %p92 = por %p90, %p91
    %p93 = scmp.ne.s32.totalorder %s85, %s88
    %p94 = scmp.eq.s32.totalorder %s11, 0
    %p95 = por %p93, %p94
    %p96 = scmp.ne.s32.totalorder %s85, %s88
    %p97 = scmp.eq.s32.totalorder %s16, 1
    %p98 = por %p96, %p97
    %p99 = scmp.ne.s32.totalorder %s88, %s89
    %p100 = scmp.eq.s32.totalorder %s16, 0
    %p101 = por %p99, %p100
    %p102 = scmp.ne.s32.totalorder %s88, %s89
    %p103 = scmp.eq.s32.totalorder %s17, 1
    %p104 = por %p102, %p103
    %p106 = scmp.ne.s32.totalorder %s89, %s105
    %p107 = scmp.eq.s32.totalorder %s17, 0
    %p108 = por %p106, %p107
    %s109 = ssub.s32 %s18, %s30
    %s110 = ssub.s32 %s19, %s26
    %s111 = sor.u32 %s109, %s110
    %p112 = scmp.eq.s32.totalorder %s111, 0
    %s114 = sadd.s32 %s113, 1
    %s115 = scalar_select %p112, %s113, %s114
    %p118 = pneg %p112
    %p119 = scmp.eq.s32.totalorder %s11, 1
    %p120 = por %p118, %p119
    %p121 = scmp.ne.s32.totalorder %s113, %s116
    %p122 = scmp.eq.s32.totalorder %s11, 0
    %p123 = por %p121, %p122
    %p124 = scmp.ne.s32.totalorder %s113, %s116
    %p125 = scmp.eq.s32.totalorder %s16, 1
    %p126 = por %p124, %p125
    %p127 = scmp.ne.s32.totalorder %s116, %s117
    %p128 = scmp.eq.s32.totalorder %s16, 0
    %p129 = por %p127, %p128
    %p130 = scmp.ne.s32.totalorder %s116, %s117
    %p131 = scmp.eq.s32.totalorder %s17, 1
    %p132 = por %p130, %p131
    %p134 = scmp.ne.s32.totalorder %s117, %s133
    %p135 = scmp.eq.s32.totalorder %s17, 0
    %p136 = por %p134, %p135
    %s137 = ssub.s32 %s19, %s26
    %s138 = ssub.s32 %s18, %s30
    %s139 = sor.u32 %s137, %s138
    %p140 = scmp.eq.s32.totalorder %s139, 0
    %s142 = sadd.s32 %s141, 1
    %s143 = scalar_select %p140, %s141, %s142
    %p146 = pneg %p140
    %p147 = scmp.eq.s32.totalorder %s11, 1
    %p148 = por %p146, %p147
    %p149 = scmp.ne.s32.totalorder %s141, %s144
    %p150 = scmp.eq.s32.totalorder %s11, 0
    %p151 = por %p149, %p150
    %p152 = scmp.ne.s32.totalorder %s141, %s144
    %p153 = scmp.eq.s32.totalorder %s16, 1
    %p154 = por %p152, %p153
    %p155 = scmp.ne.s32.totalorder %s144, %s145
    %p156 = scmp.eq.s32.totalorder %s16, 0
    %p157 = por %p155, %p156
    %p158 = scmp.ne.s32.totalorder %s144, %s145
    %p159 = scmp.eq.s32.totalorder %s17, 1
    %p160 = por %p158, %p159
    %p162 = scmp.ne.s32.totalorder %s145, %s161
    %p163 = scmp.eq.s32.totalorder %s17, 0
    %p164 = por %p162, %p163
    %p165 = scmp.le.s32.totalorder 1, %s11
    %p166 = scmp.lt.s32.totalorder %s11, 3
    %p167 = pnand %p165, %p166
    %p168 = pneg %p167
    // Predicated region
    $region9: #{residual_block.2} parent=5 // pred_check
      _
    $region10: #{residual_block.2} parent=5 // pred_check_branch
      %170 = sbr.rel (%p167) target = $region12
    $region11: #{residual_block.2} parent=5 // pred_region
      %s171 = ssub.s32 %s11, 1
      // Predicated region
      $region13: #{residual_block.2} parent=11 // pred_check
        %p172 = pneg %p75
      $region14: #{residual_block.2} parent=11 // pred_check_branch
        %174 = sbr.rel (%p172) target = $region16
      $region15: #{residual_block.2} parent=11 // pred_region
        %p175 = scmp.lt.s32.totalorder %s20, 0
        %s176 = scalar_select %p175, %s20, 0
        %s177 = smul.addr %s176, 2
        %s178 = scalar_lea.vmem %s1, %s177
      $region16: #{residual_block.2} parent=11 // pred_fallthru
        _
    $region12: #{residual_block.2} parent=5 // pred_fallthru
      _
    %p179 = scmp.lt.s32.totalorder %s11, 2
    // Predicated region
    $region17: #{residual_block.2} parent=5 // pred_check
      %p180 = pneg %p179
    $region18: #{residual_block.2} parent=5 // pred_check_branch
      %182 = sbr.rel (%p180) target = $region20
    $region19: #{residual_block.2} parent=5 // pred_region
      // Predicated region
      $region21: #{residual_block.2} parent=19 // pred_check
        %p183 = pneg %p43
      $region22: #{residual_block.2} parent=19 // pred_check_branch
        %185 = sbr.rel (%p183) target = $region24
      $region23: #{residual_block.2} parent=19 // pred_region
        %p186 = scmp.lt.s32.totalorder %s19, 1
        %s187 = scalar_select %p186, %s19, 1
        %s188 = smul.addr %s187, 6
        %s189 = smul.addr %s188, 4
        %s190 = scalar_lea.vmem %s0, %s189
      $region24: #{residual_block.2} parent=19 // pred_fallthru
        _
      // Predicated region
      $region25: #{residual_block.2} parent=19 // pred_check
        %p191 = pneg %p95
      $region26: #{residual_block.2} parent=19 // pred_check_branch
        %193 = sbr.rel (%p191) target = $region28
      $region27: #{residual_block.2} parent=19 // pred_region
        %p194 = scmp.lt.s32.totalorder %s19, 1
        %s195 = scalar_select %p194, %s19, 1
        %s196 = smul.addr %s195, 4
        %s197 = scalar_lea.vmem %s2, %s196
      $region28: #{residual_block.2} parent=19 // pred_fallthru
        _
    $region20: #{residual_block.2} parent=5 // pred_fallthru
      _
    %p198 = scmp.le.s32.totalorder 1, %s11
    %p199 = scmp.lt.s32.totalorder %s11, 3
    %p200 = pnand %p198, %p199
    %p201 = pneg %p200
    // Predicated region
    $region29: #{residual_block.2} parent=5 // pred_check
      _
    $region30: #{residual_block.2} parent=5 // pred_check_branch
      %203 = sbr.rel (%p200) target = $region32
    $region31: #{residual_block.2} parent=5 // pred_region
      %s204 = ssub.s32 %s11, 1
      %p205 = scmp.lt.s32.totalorder %s21, 1
      %s206 = scalar_select %p205, %s21, 1
      %s207 = smul.addr %s206, 6
      %s208 = smul.addr %s207, 4
      %s209 = scalar_lea.vmem %s0, %s208
      %p210 = pneg %p49
      %p211 = pneg %p46
      %p212 = scmp.lt.s32.totalorder %s20, 0
      %s213 = scalar_select %p212, %s20, 0
      %s214 = smul.addr %s213, 2
      %s215 = scalar_lea.vmem %s1, %s214
      %p216 = pneg %p75
      %p217 = pneg %p72
      %p218 = scmp.lt.s32.totalorder %s21, 1
      %s219 = scalar_select %p218, %s21, 1
      %s220 = smul.addr %s219, 4
      %s221 = scalar_lea.vmem %s2, %s220
      %p222 = pneg %p101
      %p223 = pneg %p98
      %p224 = pneg %p129
      %p225 = pneg %p126
      %s226 = smul.u32 4, %s21
      %p227 = scmp.lt.s32.totalorder %s20, 0
      %s228 = scalar_select %p227, %s20, 0
      %p229 = scmp.lt.s32.totalorder %s226, 7
      %s230 = scalar_select %p229, %s226, 7
      %s231 = smul.addr %s228, 8
      %s232 = sadd.s32 %s230, %s231
      %s233 = smul.addr %s232, 4
      %s234 = scalar_lea.vmem %s3, %s233
      %p235 = pneg %p157
      %p236 = pneg %p154
      %p237 = scmp.lt.s32.totalorder %s21, 1
      %s238 = scalar_select %p237, %s21, 1
      %p239 = scmp.lt.s32.totalorder %s20, 0
      %s240 = scalar_select %p239, %s20, 0
      %s241 = sadd.s32 %s240, %s238
      %s242 = smul.addr %s241, 4
      %s243 = scalar_lea.vmem %s4, %s242
      %p244 = scmp.lt.s32.totalorder %s21, 1
      %s245 = scalar_select %p244, %s21, 1
      %s246 = smul.addr %s245, 6
      %s247 = smul.addr %s246, 4
      %s248 = scalar_lea.vmem %s0, %s247
      %p249 = scmp.lt.s32.totalorder %s20, 0
      %s250 = scalar_select %p249, %s20, 0
      %s251 = smul.addr %s250, 2
      %s252 = scalar_lea.vmem %s1, %s251
      %p253 = scmp.lt.s32.totalorder %s21, 1
      %s254 = scalar_select %p253, %s21, 1
      %s255 = smul.addr %s254, 4
      %s256 = scalar_lea.vmem %s2, %s255
      %s257 = smul.u32 4, %s21
      %p258 = scmp.lt.s32.totalorder %s20, 0
      %s259 = scalar_select %p258, %s20, 0
      %p260 = scmp.lt.s32.totalorder %s257, 7
      %s261 = scalar_select %p260, %s257, 7
      %s262 = smul.addr %s259, 8
      %s263 = sadd.s32 %s261, %s262
      %s264 = smul.addr %s263, 4
      %s265 = scalar_lea.vmem %s3, %s264
      %s266 = smul.u32 4, %s21
      %p267 = scmp.lt.s32.totalorder %s21, 1
      %s268 = scalar_select %p267, %s21, 1
      %p269 = scmp.lt.s32.totalorder %s20, 0
      %s270 = scalar_select %p269, %s20, 0
      %s271 = sadd.s32 %s270, %s268
      %s272 = smul.addr %s271, 4
      %s273 = scalar_lea.vmem %s4, %s272
      %v275 = vld [vmem:[%s248] sm:$0xff]
      %v276 = vld [vmem:[%s248 + $0x8] sm:$0xff]
      %v277 = vld [vmem:[%s248 + $0x10] sm:$0xff]
      %281 = vst [vmem:[#allocation1] ss:$2 sm:$0xff] %v275
      %s282 = scalar_lea.vmem [#allocation1], 16
      %283 = vst [vmem:[%s282] ss:$2 sm:$0xff] %v276
      %s284 = scalar_lea.vmem [#allocation1], 32
      %285 = vst [vmem:[%s284] ss:$2 sm:$0xff] %v277
      %v286 = vld.sshfl [vmem:[#allocation1] sm:$0xff pattern:$0x75316420]
      %v287 = vld.sshfl [vmem:[#allocation1 + $0x8] sm:$0xff pattern:$0x75316420]
      %v288 = vld.sshfl [vmem:[#allocation1 + $0x10] sm:$0xff pattern:$0x75316420]
      %v289 = vld.sshfl [vmem:[#allocation1 + $0x18] sm:$0xff pattern:$0x75316420]
      %v290 = vld.sshfl [vmem:[#allocation1 + $0x20] sm:$0xff pattern:$0x75316420]
      %v291 = vld.sshfl [vmem:[#allocation1 + $0x28] sm:$0xff pattern:$0x75316420]
      %v298 = vpack.c.bf16 %v287, %v286
      %v299 = vpack.c.bf16 %v289, %v288
      %v300 = vpack.c.bf16 %v291, %v290
      %v301 = vld [vmem:[%s252] sm:$0x3]
      %s302 = scalar_lea.vmem %s252, 2
      %v303 = vld [vmem:[%s302] sm:$0x3]
      %v307 = vunpack.c.l.b16 %v298
      %v308 = vunpack.c.h.b16 %v298
      %v309 = vunpack.c.l.b16 %v299
      %v310 = vunpack.c.h.b16 %v299
      %v311 = vunpack.c.l.b16 %v300
      %v312 = vpack.c.b16 %v307, %v307
      %v313 = vpack.c.b16 %v308, %v308
      %v314 = vpack.c.b16 %v309, %v309
      %v315 = vpack.c.b16 %v310, %v310
      %v316 = vpack.c.b16 %v311, %v311
      %317 = vrot.lane.b32.xlu0 %v312, 66
      %v318 = vpop.permute.xlu0 %317
      %319 = vrot.lane.b32.xlu0 %v313, 66
      %v320 = vpop.permute.xlu0 %319
      %321 = vrot.lane.b32.xlu0 %v314, 66
      %v322 = vpop.permute.xlu0 %321
      %323 = vrot.lane.b32.xlu0 %v315, 66
      %v324 = vpop.permute.xlu0 %323
      %325 = vrot.lane.b32.xlu0 %v316, 66
      %v326 = vpop.permute.xlu0 %325
      %vm327 = vcmask 539648
      %v328 = vsel %vm327, %v318, %v320
      %v329 = vsel %vm327, %v320, %v322
      %v330 = vsel %vm327, %v322, %v324
      %v331 = vsel %vm327, %v324, %v326
      %vm332 = vcmask 31744
      %v334 = vsel %vm332, %v303, 0
      %vm336 = vcmask 1041408
      %v338 = vsel %vm336, %v328, 0
      %v341 = vsel %vm336, %v329, 0
      %v344 = vsel %vm336, %v330, 0
      %v347 = vsel %vm336, %v331, 0
      %349 = vmatpush.bf16.msra.mxu0 0
      %350 = vmatpush.bf16.msra.mxu0 0
      %351 = vmatpush.bf16.msra.mxu0 0
      %352 = vmatpush.bf16.msra.mxu0 0
      %353 = vmatpush.bf16.msra.mxu0 0
      %354 = vmatpush.bf16.msra.mxu0 0
      %355 = vmatpush.bf16.msra.mxu0 0
      %356 = vmatpush.bf16.msra.mxu0 %v338
      %357 = vmatmul.bf16.gmra.mxu0 %v334
      %v358 = vpop.f32.mrf.mxu0
      %v359 = vadd.f32 0.0, %v358
      %v360 = vpop.f32.mrf.mxu0
      %361 = vdwg.mxu0
      %362 = vmatpush.bf16.msra.mxu0 0
      %363 = vmatpush.bf16.msra.mxu0 0
      %364 = vmatpush.bf16.msra.mxu0 0
      %365 = vmatpush.bf16.msra.mxu0 0
      %366 = vmatpush.bf16.msra.mxu0 0
      %367 = vmatpush.bf16.msra.mxu0 0
      %368 = vmatpush.bf16.msra.mxu0 0
      %369 = vmatpush.bf16.msra.mxu0 %v341
      %370 = vmatmul.bf16.gmra.mxu0 %v334
      %v371 = vpop.f32.mrf.mxu0
      %v372 = vadd.f32 0.0, %v371
      %v373 = vpop.f32.mrf.mxu0
      %374 = vdwg.mxu0
      %375 = vmatpush.bf16.msra.mxu0 0
      %376 = vmatpush.bf16.msra.mxu0 0
      %377 = vmatpush.bf16.msra.mxu0 0
      %378 = vmatpush.bf16.msra.mxu0 0
      %379 = vmatpush.bf16.msra.mxu0 0
      %380 = vmatpush.bf16.msra.mxu0 0
      %381 = vmatpush.bf16.msra.mxu0 0
      %382 = vmatpush.bf16.msra.mxu0 %v344
      %383 = vmatmul.bf16.gmra.mxu0 %v334
      %v384 = vpop.f32.mrf.mxu0
      %v385 = vadd.f32 0.0, %v384
      %v386 = vpop.f32.mrf.mxu0
      %387 = vdwg.mxu0
      %388 = vmatpush.bf16.msra.mxu0 0
      %389 = vmatpush.bf16.msra.mxu0 0
      %390 = vmatpush.bf16.msra.mxu0 0
      %391 = vmatpush.bf16.msra.mxu0 0
      %392 = vmatpush.bf16.msra.mxu0 0
      %393 = vmatpush.bf16.msra.mxu0 0
      %394 = vmatpush.bf16.msra.mxu0 0
      %395 = vmatpush.bf16.msra.mxu0 %v347
      %396 = vmatmul.bf16.gmra.mxu0 %v334
      %v397 = vpop.f32.mrf.mxu0
      %v398 = vadd.f32 0.0, %v397
      %v399 = vpop.f32.mrf.mxu0
      %400 = vdwg.mxu0
      %401 = vrot.lane.b32.xlu0 %v312, 69
      %v402 = vpop.permute.xlu0 %401
      %403 = vrot.lane.b32.xlu0 %v313, 69
      %v404 = vpop.permute.xlu0 %403
      %405 = vrot.lane.b32.xlu0 %v314, 69
      %v406 = vpop.permute.xlu0 %405
      %407 = vrot.lane.b32.xlu0 %v315, 69
      %v408 = vpop.permute.xlu0 %407
      %409 = vrot.lane.b32.xlu0 %v316, 69
      %v410 = vpop.permute.xlu0 %409
      %vm411 = vcmask 564224
      %v412 = vsel %vm411, %v402, %v404
      %v413 = vsel %vm411, %v404, %v406
      %v414 = vsel %vm411, %v406, %v408
      %v415 = vsel %vm411, %v408, %v410
      %v417 = vsel %vm332, %v301, 0
      %v420 = vsel %vm336, %v412, 0
      %v423 = vsel %vm336, %v413, 0
      %v426 = vsel %vm336, %v414, 0
      %v429 = vsel %vm336, %v415, 0
      %431 = vmatpush.bf16.msra.mxu0 0
      %432 = vmatpush.bf16.msra.mxu0 0
      %433 = vmatpush.bf16.msra.mxu0 0
      %434 = vmatpush.bf16.msra.mxu0 0
      %435 = vmatpush.bf16.msra.mxu0 0
      %436 = vmatpush.bf16.msra.mxu0 0
      %437 = vmatpush.bf16.msra.mxu0 0
      %438 = vmatpush.bf16.msra.mxu0 %v420
      %439 = vmatmul.bf16.gmra.mxu0 %v417
      %v440 = vpop.f32.mrf.mxu0
      %v441 = vadd.f32 %v359, %v440
      %v442 = vpop.f32.mrf.mxu0
      %443 = vdwg.mxu0
      %444 = vmatpush.bf16.msra.mxu0 0
      %445 = vmatpush.bf16.msra.mxu0 0
      %446 = vmatpush.bf16.msra.mxu0 0
      %447 = vmatpush.bf16.msra.mxu0 0
      %448 = vmatpush.bf16.msra.mxu0 0
      %449 = vmatpush.bf16.msra.mxu0 0
      %450 = vmatpush.bf16.msra.mxu0 0
      %451 = vmatpush.bf16.msra.mxu0 %v423
      %452 = vmatmul.bf16.gmra.mxu0 %v417
      %v453 = vpop.f32.mrf.mxu0
      %v454 = vadd.f32 %v372, %v453
      %v455 = vpop.f32.mrf.mxu0
      %456 = vdwg.mxu0
      %457 = vmatpush.bf16.msra.mxu0 0
      %458 = vmatpush.bf16.msra.mxu0 0
      %459 = vmatpush.bf16.msra.mxu0 0
      %460 = vmatpush.bf16.msra.mxu0 0
      %461 = vmatpush.bf16.msra.mxu0 0
      %462 = vmatpush.bf16.msra.mxu0 0
      %463 = vmatpush.bf16.msra.mxu0 0
      %464 = vmatpush.bf16.msra.mxu0 %v426
      %465 = vmatmul.bf16.gmra.mxu0 %v417
      %v466 = vpop.f32.mrf.mxu0
      %v467 = vadd.f32 %v385, %v466
      %v468 = vpop.f32.mrf.mxu0
      %469 = vdwg.mxu0
      %470 = vmatpush.bf16.msra.mxu0 0
      %471 = vmatpush.bf16.msra.mxu0 0
      %472 = vmatpush.bf16.msra.mxu0 0
      %473 = vmatpush.bf16.msra.mxu0 0
      %474 = vmatpush.bf16.msra.mxu0 0
      %475 = vmatpush.bf16.msra.mxu0 0
      %476 = vmatpush.bf16.msra.mxu0 0
      %477 = vmatpush.bf16.msra.mxu0 %v429
      %478 = vmatmul.bf16.gmra.mxu0 %v417
      %v479 = vpop.f32.mrf.mxu0
      %v480 = vadd.f32 %v398, %v479
      %v481 = vpop.f32.mrf.mxu0
      %482 = vdwg.mxu0
      %s483 = scalar_lea.vmem %s252, 4
      %v484 = vld [vmem:[%s483] sm:$0x3]
      %485 = vrot.lane.b32.xlu0 %v312, 63
      %v486 = vpop.permute.xlu0 %485
      %487 = vrot.lane.b32.xlu0 %v313, 63
      %v488 = vpop.permute.xlu0 %487
      %489 = vrot.lane.b32.xlu0 %v314, 63
      %v490 = vpop.permute.xlu0 %489
      %491 = vrot.lane.b32.xlu0 %v315, 63
      %v492 = vpop.permute.xlu0 %491
      %493 = vrot.lane.b32.xlu0 %v316, 63
      %v494 = vpop.permute.xlu0 %493
      %vm495 = vcmask 515072
      %v496 = vsel %vm495, %v486, %v488
      %v497 = vsel %vm495, %v488, %v490
      %v498 = vsel %vm495, %v490, %v492
      %v499 = vsel %vm495, %v492, %v494
      %v501 = vsel %vm332, %v484, 0
      %v504 = vsel %vm336, %v496, 0
      %v507 = vsel %vm336, %v497, 0
      %v510 = vsel %vm336, %v498, 0
      %v513 = vsel %vm336, %v499, 0
      %515 = vmatpush.bf16.msra.mxu0 0
      %516 = vmatpush.bf16.msra.mxu0 0
      %517 = vmatpush.bf16.msra.mxu0 0
      %518 = vmatpush.bf16.msra.mxu0 0
      %519 = vmatpush.bf16.msra.mxu0 0
      %520 = vmatpush.bf16.msra.mxu0 0
      %521 = vmatpush.bf16.msra.mxu0 0
      %522 = vmatpush.bf16.msra.mxu0 %v504
      %523 = vmatmul.bf16.gmra.mxu0 %v501
      %v524 = vpop.f32.mrf.mxu0
      %v525 = vadd.f32 0.0, %v524
      %v526 = vpop.f32.mrf.mxu0
      %527 = vdwg.mxu0
      %528 = vmatpush.bf16.msra.mxu0 0
      %529 = vmatpush.bf16.msra.mxu0 0
      %530 = vmatpush.bf16.msra.mxu0 0
      %531 = vmatpush.bf16.msra.mxu0 0
      %532 = vmatpush.bf16.msra.mxu0 0
      %533 = vmatpush.bf16.msra.mxu0 0
      %534 = vmatpush.bf16.msra.mxu0 0
      %535 = vmatpush.bf16.msra.mxu0 %v507
      %536 = vmatmul.bf16.gmra.mxu0 %v501
      %v537 = vpop.f32.mrf.mxu0
      %v538 = vadd.f32 0.0, %v537
      %v539 = vpop.f32.mrf.mxu0
      %540 = vdwg.mxu0
      %541 = vmatpush.bf16.msra.mxu0 0
      %542 = vmatpush.bf16.msra.mxu0 0
      %543 = vmatpush.bf16.msra.mxu0 0
      %544 = vmatpush.bf16.msra.mxu0 0
      %545 = vmatpush.bf16.msra.mxu0 0
      %546 = vmatpush.bf16.msra.mxu0 0
      %547 = vmatpush.bf16.msra.mxu0 0
      %548 = vmatpush.bf16.msra.mxu0 %v510
      %549 = vmatmul.bf16.gmra.mxu0 %v501
      %v550 = vpop.f32.mrf.mxu0
      %v551 = vadd.f32 0.0, %v550
      %v552 = vpop.f32.mrf.mxu0
      %553 = vdwg.mxu0
      %554 = vmatpush.bf16.msra.mxu0 0
      %555 = vmatpush.bf16.msra.mxu0 0
      %556 = vmatpush.bf16.msra.mxu0 0
      %557 = vmatpush.bf16.msra.mxu0 0
      %558 = vmatpush.bf16.msra.mxu0 0
      %559 = vmatpush.bf16.msra.mxu0 0
      %560 = vmatpush.bf16.msra.mxu0 0
      %561 = vmatpush.bf16.msra.mxu0 %v513
      %562 = vmatmul.bf16.gmra.mxu0 %v501
      %v563 = vpop.f32.mrf.mxu0
      %v564 = vadd.f32 0.0, %v563
      %v565 = vpop.f32.mrf.mxu0
      %566 = vdwg.mxu0
      %v567 = vadd.f32 %v441, %v525
      %v568 = vadd.f32 %v454, %v538
      %v569 = vadd.f32 %v467, %v551
      %v570 = vadd.f32 %v480, %v564
      %s571 = scalar_lea.vmem %s252, 6
      %v572 = vld [vmem:[%s571] sm:$0x3]
      %573 = vrot.lane.b32.xlu0 %v312, 3
      %v574 = vpop.permute.xlu0 %573
      %575 = vrot.lane.b32.xlu0 %v313, 3
      %v576 = vpop.permute.xlu0 %575
      %577 = vrot.lane.b32.xlu0 %v314, 3
      %v578 = vpop.permute.xlu0 %577
      %579 = vrot.lane.b32.xlu0 %v315, 3
      %v580 = vpop.permute.xlu0 %579
      %581 = vrot.lane.b32.xlu0 %v316, 3
      %v582 = vpop.permute.xlu0 %581
      %vm583 = vcmask 23552
      %v584 = vsel %vm583, %v574, %v576
      %v585 = vsel %vm583, %v576, %v578
      %v586 = vsel %vm583, %v578, %v580
      %v587 = vsel %vm583, %v580, %v582
      %v589 = vsel %vm332, %v572, 0
      %v592 = vsel %vm336, %v584, 0
      %v595 = vsel %vm336, %v585, 0
      %v598 = vsel %vm336, %v586, 0
      %v601 = vsel %vm336, %v587, 0
      %603 = vmatpush.bf16.msra.mxu0 0
      %604 = vmatpush.bf16.msra.mxu0 0
      %605 = vmatpush.bf16.msra.mxu0 0
      %606 = vmatpush.bf16.msra.mxu0 0
      %607 = vmatpush.bf16.msra.mxu0 0
      %608 = vmatpush.bf16.msra.mxu0 0
      %609 = vmatpush.bf16.msra.mxu0 0
      %610 = vmatpush.bf16.msra.mxu0 %v592
      %611 = vmatmul.bf16.gmra.mxu0 %v589
      %v612 = vpop.f32.mrf.mxu0
      %v613 = vadd.f32 0.0, %v612
      %v614 = vpop.f32.mrf.mxu0
      %615 = vdwg.mxu0
      %616 = vmatpush.bf16.msra.mxu0 0
      %617 = vmatpush.bf16.msra.mxu0 0
      %618 = vmatpush.bf16.msra.mxu0 0
      %619 = vmatpush.bf16.msra.mxu0 0
      %620 = vmatpush.bf16.msra.mxu0 0
      %621 = vmatpush.bf16.msra.mxu0 0
      %622 = vmatpush.bf16.msra.mxu0 0
      %623 = vmatpush.bf16.msra.mxu0 %v595
      %624 = vmatmul.bf16.gmra.mxu0 %v589
      %v625 = vpop.f32.mrf.mxu0
      %v626 = vadd.f32 0.0, %v625
      %v627 = vpop.f32.mrf.mxu0
      %628 = vdwg.mxu0
      %629 = vmatpush.bf16.msra.mxu0 0
      %630 = vmatpush.bf16.msra.mxu0 0
      %631 = vmatpush.bf16.msra.mxu0 0
      %632 = vmatpush.bf16.msra.mxu0 0
      %633 = vmatpush.bf16.msra.mxu0 0
      %634 = vmatpush.bf16.msra.mxu0 0
      %635 = vmatpush.bf16.msra.mxu0 0
      %636 = vmatpush.bf16.msra.mxu0 %v598
      %637 = vmatmul.bf16.gmra.mxu0 %v589
      %v638 = vpop.f32.mrf.mxu0
      %v639 = vadd.f32 0.0, %v638
      %v640 = vpop.f32.mrf.mxu0
      %641 = vdwg.mxu0
      %642 = vmatpush.bf16.msra.mxu0 0
      %643 = vmatpush.bf16.msra.mxu0 0
      %644 = vmatpush.bf16.msra.mxu0 0
      %645 = vmatpush.bf16.msra.mxu0 0
      %646 = vmatpush.bf16.msra.mxu0 0
      %647 = vmatpush.bf16.msra.mxu0 0
      %648 = vmatpush.bf16.msra.mxu0 0
      %649 = vmatpush.bf16.msra.mxu0 %v601
      %650 = vmatmul.bf16.gmra.mxu0 %v589
      %v651 = vpop.f32.mrf.mxu0
      %v652 = vadd.f32 0.0, %v651
      %v653 = vpop.f32.mrf.mxu0
      %654 = vdwg.mxu0
      %v655 = vadd.f32 %v567, %v613
      %v656 = vadd.f32 %v568, %v626
      %v657 = vadd.f32 %v569, %v639
      %v658 = vadd.f32 %v570, %v652
      %s659 = scalar_lea.vmem %s252, 8
      %v660 = vld [vmem:[%s659] sm:$0x3]
      %v662 = vsel %vm332, %v660, 0
      %v665 = vsel %vm336, %v313, 0
      %v668 = vsel %vm336, %v314, 0
      %v671 = vsel %vm336, %v315, 0
      %v674 = vsel %vm336, %v316, 0
      %676 = vmatpush.bf16.msra.mxu0 0
      %677 = vmatpush.bf16.msra.mxu0 0
      %678 = vmatpush.bf16.msra.mxu0 0
      %679 = vmatpush.bf16.msra.mxu0 0
      %680 = vmatpush.bf16.msra.mxu0 0
      %681 = vmatpush.bf16.msra.mxu0 0
      %682 = vmatpush.bf16.msra.mxu0 0
      %683 = vmatpush.bf16.msra.mxu0 %v665
      %684 = vmatmul.bf16.gmra.mxu0 %v662
      %v685 = vpop.f32.mrf.mxu0
      %v686 = vadd.f32 0.0, %v685
      %v687 = vpop.f32.mrf.mxu0
      %688 = vdwg.mxu0
      %689 = vmatpush.bf16.msra.mxu0 0
      %690 = vmatpush.bf16.msra.mxu0 0
      %691 = vmatpush.bf16.msra.mxu0 0
      %692 = vmatpush.bf16.msra.mxu0 0
      %693 = vmatpush.bf16.msra.mxu0 0
      %694 = vmatpush.bf16.msra.mxu0 0
      %695 = vmatpush.bf16.msra.mxu0 0
      %696 = vmatpush.bf16.msra.mxu0 %v668
      %697 = vmatmul.bf16.gmra.mxu0 %v662
      %v698 = vpop.f32.mrf.mxu0
      %v699 = vadd.f32 0.0, %v698
      %v700 = vpop.f32.mrf.mxu0
      %701 = vdwg.mxu0
      %702 = vmatpush.bf16.msra.mxu0 0
      %703 = vmatpush.bf16.msra.mxu0 0
      %704 = vmatpush.bf16.msra.mxu0 0
      %705 = vmatpush.bf16.msra.mxu0 0
      %706 = vmatpush.bf16.msra.mxu0 0
      %707 = vmatpush.bf16.msra.mxu0 0
      %708 = vmatpush.bf16.msra.mxu0 0
      %709 = vmatpush.bf16.msra.mxu0 %v671
      %710 = vmatmul.bf16.gmra.mxu0 %v662
      %v711 = vpop.f32.mrf.mxu0
      %v712 = vadd.f32 0.0, %v711
      %v713 = vpop.f32.mrf.mxu0
      %714 = vdwg.mxu0
      %715 = vmatpush.bf16.msra.mxu0 0
      %716 = vmatpush.bf16.msra.mxu0 0
      %717 = vmatpush.bf16.msra.mxu0 0
      %718 = vmatpush.bf16.msra.mxu0 0
      %719 = vmatpush.bf16.msra.mxu0 0
      %720 = vmatpush.bf16.msra.mxu0 0
      %721 = vmatpush.bf16.msra.mxu0 0
      %722 = vmatpush.bf16.msra.mxu0 %v674
      %723 = vmatmul.bf16.gmra.mxu0 %v662
      %v724 = vpop.f32.mrf.mxu0
      %v725 = vadd.f32 0.0, %v724
      %v726 = vpop.f32.mrf.mxu0
      %727 = vdwg.mxu0
      %v728 = vadd.f32 %v655, %v686
      %v729 = vadd.f32 %v656, %v699
      %v730 = vadd.f32 %v657, %v712
      %v731 = vadd.f32 %v658, %v725
      %s732 = scalar_lea.vmem %s252, 10
      %v733 = vld [vmem:[%s732] sm:$0x3]
      %v734 = vunpack.c.h.b16 %v300
      %v735 = vpack.c.b16 %v734, %v734
      %736 = vrot.lane.b32.xlu0 %v313, 125
      %v737 = vpop.permute.xlu0 %736
      %738 = vrot.lane.b32.xlu0 %v314, 125
      %v739 = vpop.permute.xlu0 %738
      %740 = vrot.lane.b32.xlu0 %v315, 125
      %v741 = vpop.permute.xlu0 %740
      %742 = vrot.lane.b32.xlu0 %v316, 125
      %v743 = vpop.permute.xlu0 %742
      %744 = vrot.lane.b32.xlu0 %v735, 125
      %v745 = vpop.permute.xlu0 %744
      %vm746 = vcmask 1022976
      %v747 = vsel %vm746, %v737, %v739
      %v748 = vsel %vm746, %v739, %v741
      %v749 = vsel %vm746, %v741, %v743
      %v750 = vsel %vm746, %v743, %v745
      %v752 = vsel %vm332, %v733, 0
      %v755 = vsel %vm336, %v747, 0
      %v758 = vsel %vm336, %v748, 0
      %v761 = vsel %vm336, %v749, 0
      %v764 = vsel %vm336, %v750, 0
      %766 = vmatpush.bf16.msra.mxu0 0
      %767 = vmatpush.bf16.msra.mxu0 0
      %768 = vmatpush.bf16.msra.mxu0 0
      %769 = vmatpush.bf16.msra.mxu0 0
      %770 = vmatpush.bf16.msra.mxu0 0
      %771 = vmatpush.bf16.msra.mxu0 0
      %772 = vmatpush.bf16.msra.mxu0 0
      %773 = vmatpush.bf16.msra.mxu0 %v755
      %774 = vmatmul.bf16.gmra.mxu0 %v752
      %v775 = vpop.f32.mrf.mxu0
      %v776 = vadd.f32 0.0, %v775
      %v777 = vpop.f32.mrf.mxu0
      %778 = vdwg.mxu0
      %779 = vmatpush.bf16.msra.mxu0 0
      %780 = vmatpush.bf16.msra.mxu0 0
      %781 = vmatpush.bf16.msra.mxu0 0
      %782 = vmatpush.bf16.msra.mxu0 0
      %783 = vmatpush.bf16.msra.mxu0 0
      %784 = vmatpush.bf16.msra.mxu0 0
      %785 = vmatpush.bf16.msra.mxu0 0
      %786 = vmatpush.bf16.msra.mxu0 %v758
      %787 = vmatmul.bf16.gmra.mxu0 %v752
      %v788 = vpop.f32.mrf.mxu0
      %v789 = vadd.f32 0.0, %v788
      %v790 = vpop.f32.mrf.mxu0
      %791 = vdwg.mxu0
      %792 = vmatpush.bf16.msra.mxu0 0
      %793 = vmatpush.bf16.msra.mxu0 0
      %794 = vmatpush.bf16.msra.mxu0 0
      %795 = vmatpush.bf16.msra.mxu0 0
      %796 = vmatpush.bf16.msra.mxu0 0
      %797 = vmatpush.bf16.msra.mxu0 0
      %798 = vmatpush.bf16.msra.mxu0 0
      %799 = vmatpush.bf16.msra.mxu0 %v761
      %800 = vmatmul.bf16.gmra.mxu0 %v752
      %v801 = vpop.f32.mrf.mxu0
      %v802 = vadd.f32 0.0, %v801
      %v803 = vpop.f32.mrf.mxu0
      %804 = vdwg.mxu0
      %805 = vmatpush.bf16.msra.mxu0 0
      %806 = vmatpush.bf16.msra.mxu0 0
      %807 = vmatpush.bf16.msra.mxu0 0
      %808 = vmatpush.bf16.msra.mxu0 0
      %809 = vmatpush.bf16.msra.mxu0 0
      %810 = vmatpush.bf16.msra.mxu0 0
      %811 = vmatpush.bf16.msra.mxu0 0
      %812 = vmatpush.bf16.msra.mxu0 %v764
      %813 = vmatmul.bf16.gmra.mxu0 %v752
      %v814 = vpop.f32.mrf.mxu0
      %v815 = vadd.f32 0.0, %v814
      %v816 = vpop.f32.mrf.mxu0
      %817 = vdwg.mxu0
      %v818 = vadd.f32 %v728, %v776
      %v819 = vadd.f32 %v729, %v789
      %v820 = vadd.f32 %v730, %v802
      %v821 = vadd.f32 %v731, %v815
      %s822 = scalar_lea.vmem %s252, 12
      %v823 = vld [vmem:[%s822] sm:$0x3]
      %824 = vrot.lane.b32.xlu0 %v313, 65
      %v825 = vpop.permute.xlu0 %824
      %826 = vrot.lane.b32.xlu0 %v314, 65
      %v827 = vpop.permute.xlu0 %826
      %828 = vrot.lane.b32.xlu0 %v315, 65
      %v829 = vpop.permute.xlu0 %828
      %830 = vrot.lane.b32.xlu0 %v316, 65
      %v831 = vpop.permute.xlu0 %830
      %832 = vrot.lane.b32.xlu0 %v735, 65
      %v833 = vpop.permute.xlu0 %832
      %vm834 = vcmask 531456
      %v835 = vsel %vm834, %v825, %v827
      %v836 = vsel %vm834, %v827, %v829
      %v837 = vsel %vm834, %v829, %v831
      %v838 = vsel %vm834, %v831, %v833
      %v840 = vsel %vm332, %v823, 0
      %v843 = vsel %vm336, %v835, 0
      %v846 = vsel %vm336, %v836, 0
      %v849 = vsel %vm336, %v837, 0
      %v852 = vsel %vm336, %v838, 0
      %854 = vmatpush.bf16.msra.mxu0 0
      %855 = vmatpush.bf16.msra.mxu0 0
      %856 = vmatpush.bf16.msra.mxu0 0
      %857 = vmatpush.bf16.msra.mxu0 0
      %858 = vmatpush.bf16.msra.mxu0 0
      %859 = vmatpush.bf16.msra.mxu0 0
      %860 = vmatpush.bf16.msra.mxu0 0
      %861 = vmatpush.bf16.msra.mxu0 %v843
      %862 = vmatmul.bf16.gmra.mxu0 %v840
      %v863 = vpop.f32.mrf.mxu0
      %v864 = vadd.f32 0.0, %v863
      %v865 = vpop.f32.mrf.mxu0
      %866 = vdwg.mxu0
      %867 = vmatpush.bf16.msra.mxu0 0
      %868 = vmatpush.bf16.msra.mxu0 0
      %869 = vmatpush.bf16.msra.mxu0 0
      %870 = vmatpush.bf16.msra.mxu0 0
      %871 = vmatpush.bf16.msra.mxu0 0
      %872 = vmatpush.bf16.msra.mxu0 0
      %873 = vmatpush.bf16.msra.mxu0 0
      %874 = vmatpush.bf16.msra.mxu0 %v846
      %875 = vmatmul.bf16.gmra.mxu0 %v840
      %v876 = vpop.f32.mrf.mxu0
      %v877 = vadd.f32 0.0, %v876
      %v878 = vpop.f32.mrf.mxu0
      %879 = vdwg.mxu0
      %880 = vmatpush.bf16.msra.mxu0 0
      %881 = vmatpush.bf16.msra.mxu0 0
      %882 = vmatpush.bf16.msra.mxu0 0
      %883 = vmatpush.bf16.msra.mxu0 0
      %884 = vmatpush.bf16.msra.mxu0 0
      %885 = vmatpush.bf16.msra.mxu0 0
      %886 = vmatpush.bf16.msra.mxu0 0
      %887 = vmatpush.bf16.msra.mxu0 %v849
      %888 = vmatmul.bf16.gmra.mxu0 %v840
      %v889 = vpop.f32.mrf.mxu0
      %v890 = vadd.f32 0.0, %v889
      %v891 = vpop.f32.mrf.mxu0
      %892 = vdwg.mxu0
      %893 = vmatpush.bf16.msra.mxu0 0
      %894 = vmatpush.bf16.msra.mxu0 0
      %895 = vmatpush.bf16.msra.mxu0 0
      %896 = vmatpush.bf16.msra.mxu0 0
      %897 = vmatpush.bf16.msra.mxu0 0
      %898 = vmatpush.bf16.msra.mxu0 0
      %899 = vmatpush.bf16.msra.mxu0 0
      %900 = vmatpush.bf16.msra.mxu0 %v852
      %901 = vmatmul.bf16.gmra.mxu0 %v840
      %v902 = vpop.f32.mrf.mxu0
      %v903 = vadd.f32 0.0, %v902
      %v904 = vpop.f32.mrf.mxu0
      %905 = vdwg.mxu0
      %v906 = vadd.f32 %v818, %v864
      %v907 = vadd.f32 %v819, %v877
      %v908 = vadd.f32 %v820, %v890
      %v909 = vadd.f32 %v821, %v903
      %s910 = scalar_lea.vmem %s252, 14
      %v911 = vld [vmem:[%s910] sm:$0x3]
      %912 = vrot.lane.b32.xlu0 %v313, 62
      %v913 = vpop.permute.xlu0 %912
      %914 = vrot.lane.b32.xlu0 %v314, 62
      %v915 = vpop.permute.xlu0 %914
      %916 = vrot.lane.b32.xlu0 %v315, 62
      %v917 = vpop.permute.xlu0 %916
      %918 = vrot.lane.b32.xlu0 %v316, 62
      %v919 = vpop.permute.xlu0 %918
      %920 = vrot.lane.b32.xlu0 %v735, 62
      %v921 = vpop.permute.xlu0 %920
      %vm922 = vcmask 506880
      %v923 = vsel %vm922, %v913, %v915
      %v924 = vsel %vm922, %v915, %v917
      %v925 = vsel %vm922, %v917, %v919
      %v926 = vsel %vm922, %v919, %v921
      %v928 = vsel %vm332, %v911, 0
      %v931 = vsel %vm336, %v923, 0
      %v934 = vsel %vm336, %v924, 0
      %v937 = vsel %vm336, %v925, 0
      %v940 = vsel %vm336, %v926, 0
      %942 = vmatpush.bf16.msra.mxu0 0
      %943 = vmatpush.bf16.msra.mxu0 0
      %944 = vmatpush.bf16.msra.mxu0 0
      %945 = vmatpush.bf16.msra.mxu0 0
      %946 = vmatpush.bf16.msra.mxu0 0
      %947 = vmatpush.bf16.msra.mxu0 0
      %948 = vmatpush.bf16.msra.mxu0 0
      %949 = vmatpush.bf16.msra.mxu0 %v931
      %950 = vmatmul.bf16.gmra.mxu0 %v928
      %v951 = vpop.f32.mrf.mxu0
      %v952 = vadd.f32 0.0, %v951
      %v953 = vpop.f32.mrf.mxu0
      %954 = vdwg.mxu0
      %955 = vmatpush.bf16.msra.mxu0 0
      %956 = vmatpush.bf16.msra.mxu0 0
      %957 = vmatpush.bf16.msra.mxu0 0
      %958 = vmatpush.bf16.msra.mxu0 0
      %959 = vmatpush.bf16.msra.mxu0 0
      %960 = vmatpush.bf16.msra.mxu0 0
      %961 = vmatpush.bf16.msra.mxu0 0
      %962 = vmatpush.bf16.msra.mxu0 %v934
      %963 = vmatmul.bf16.gmra.mxu0 %v928
      %v964 = vpop.f32.mrf.mxu0
      %v965 = vadd.f32 0.0, %v964
      %v966 = vpop.f32.mrf.mxu0
      %967 = vdwg.mxu0
      %968 = vmatpush.bf16.msra.mxu0 0
      %969 = vmatpush.bf16.msra.mxu0 0
      %970 = vmatpush.bf16.msra.mxu0 0
      %971 = vmatpush.bf16.msra.mxu0 0
      %972 = vmatpush.bf16.msra.mxu0 0
      %973 = vmatpush.bf16.msra.mxu0 0
      %974 = vmatpush.bf16.msra.mxu0 0
      %975 = vmatpush.bf16.msra.mxu0 %v937
      %976 = vmatmul.bf16.gmra.mxu0 %v928
      %v977 = vpop.f32.mrf.mxu0
      %v978 = vadd.f32 0.0, %v977
      %v979 = vpop.f32.mrf.mxu0
      %980 = vdwg.mxu0
      %981 = vmatpush.bf16.msra.mxu0 0
      %982 = vmatpush.bf16.msra.mxu0 0
      %983 = vmatpush.bf16.msra.mxu0 0
      %984 = vmatpush.bf16.msra.mxu0 0
      %985 = vmatpush.bf16.msra.mxu0 0
      %986 = vmatpush.bf16.msra.mxu0 0
      %987 = vmatpush.bf16.msra.mxu0 0
      %988 = vmatpush.bf16.msra.mxu0 %v940
      %989 = vmatmul.bf16.gmra.mxu0 %v928
      %v990 = vpop.f32.mrf.mxu0
      %v991 = vadd.f32 0.0, %v990
      %v992 = vpop.f32.mrf.mxu0
      %993 = vdwg.mxu0
      %v994 = vadd.f32 %v906, %v952
      %v995 = vadd.f32 %v907, %v965
      %v996 = vadd.f32 %v908, %v978
      %v997 = vadd.f32 %v909, %v991
      %s998 = scalar_lea.vmem %s252, 16
      %v999 = vld [vmem:[%s998] sm:$0x3]
      %1000 = vrot.lane.b32.xlu0 %v313, 59
      %v1001 = vpop.permute.xlu0 %1000
      %1002 = vrot.lane.b32.xlu0 %v314, 59
      %v1003 = vpop.permute.xlu0 %1002
      %1004 = vrot.lane.b32.xlu0 %v315, 59
      %v1005 = vpop.permute.xlu0 %1004
      %1006 = vrot.lane.b32.xlu0 %v316, 59
      %v1007 = vpop.permute.xlu0 %1006
      %1008 = vrot.lane.b32.xlu0 %v735, 59
      %v1009 = vpop.permute.xlu0 %1008
      %vm1010 = vcmask 482304
      %v1011 = vsel %vm1010, %v1001, %v1003
      %v1012 = vsel %vm1010, %v1003, %v1005
      %v1013 = vsel %vm1010, %v1005, %v1007
      %v1014 = vsel %vm1010, %v1007, %v1009
      %v1016 = vsel %vm332, %v999, 0
      %v1019 = vsel %vm336, %v1011, 0
      %v1022 = vsel %vm336, %v1012, 0
      %v1025 = vsel %vm336, %v1013, 0
      %v1028 = vsel %vm336, %v1014, 0
      %1030 = vmatpush.bf16.msra.mxu0 0
      %1031 = vmatpush.bf16.msra.mxu0 0
      %1032 = vmatpush.bf16.msra.mxu0 0
      %1033 = vmatpush.bf16.msra.mxu0 0
      %1034 = vmatpush.bf16.msra.mxu0 0
      %1035 = vmatpush.bf16.msra.mxu0 0
      %1036 = vmatpush.bf16.msra.mxu0 0
      %1037 = vmatpush.bf16.msra.mxu0 %v1019
      %1038 = vmatmul.bf16.gmra.mxu0 %v1016
      %v1039 = vpop.f32.mrf.mxu0
      %v1040 = vadd.f32 0.0, %v1039
      %v1041 = vpop.f32.mrf.mxu0
      %1042 = vdwg.mxu0
      %1043 = vmatpush.bf16.msra.mxu0 0
      %1044 = vmatpush.bf16.msra.mxu0 0
      %1045 = vmatpush.bf16.msra.mxu0 0
      %1046 = vmatpush.bf16.msra.mxu0 0
      %1047 = vmatpush.bf16.msra.mxu0 0
      %1048 = vmatpush.bf16.msra.mxu0 0
      %1049 = vmatpush.bf16.msra.mxu0 0
      %1050 = vmatpush.bf16.msra.mxu0 %v1022
      %1051 = vmatmul.bf16.gmra.mxu0 %v1016
      %v1052 = vpop.f32.mrf.mxu0
      %v1053 = vadd.f32 0.0, %v1052
      %v1054 = vpop.f32.mrf.mxu0
      %1055 = vdwg.mxu0
      %1056 = vmatpush.bf16.msra.mxu0 0
      %1057 = vmatpush.bf16.msra.mxu0 0
      %1058 = vmatpush.bf16.msra.mxu0 0
      %1059 = vmatpush.bf16.msra.mxu0 0
      %1060 = vmatpush.bf16.msra.mxu0 0
      %1061 = vmatpush.bf16.msra.mxu0 0
      %1062 = vmatpush.bf16.msra.mxu0 0
      %1063 = vmatpush.bf16.msra.mxu0 %v1025
      %1064 = vmatmul.bf16.gmra.mxu0 %v1016
      %v1065 = vpop.f32.mrf.mxu0
      %v1066 = vadd.f32 0.0, %v1065
      %v1067 = vpop.f32.mrf.mxu0
      %1068 = vdwg.mxu0
      %1069 = vmatpush.bf16.msra.mxu0 0
      %1070 = vmatpush.bf16.msra.mxu0 0
      %1071 = vmatpush.bf16.msra.mxu0 0
      %1072 = vmatpush.bf16.msra.mxu0 0
      %1073 = vmatpush.bf16.msra.mxu0 0
      %1074 = vmatpush.bf16.msra.mxu0 0
      %1075 = vmatpush.bf16.msra.mxu0 0
      %1076 = vmatpush.bf16.msra.mxu0 %v1028
      %1077 = vmatmul.bf16.gmra.mxu0 %v1016
      %v1078 = vpop.f32.mrf.mxu0
      %v1079 = vadd.f32 0.0, %v1078
      %v1080 = vpop.f32.mrf.mxu0
      %1081 = vdwg.mxu0
      %v1082 = vadd.f32 %v994, %v1040
      %v1083 = vadd.f32 %v995, %v1053
      %v1084 = vadd.f32 %v996, %v1066
      %v1085 = vadd.f32 %v997, %v1079
      %v1090 = vrot.slane %v1083, 4
      %v1091 = vrot.slane %v1085, 4
      %vm1092 = vcmask 1043456
      %v1093 = vsel %vm1092, %v1082, %v1090
      %v1094 = vsel %vm1092, %v1084, %v1091
      %1097 = vst [vmem:[%s265] sm:$0xff] %v1093
      %1098 = vst [vmem:[%s265 + $0x8] sm:$0xff] %v1094
      %v1099 = vld [vmem:[%s256] sm:$0xf]
      %v1101 = vperm.slane %v1099, 0
      %v1102 = vperm.slane %v1099, 1
      %v1103 = vperm.slane %v1099, 2
      %v1104 = vperm.slane %v1099, 3
      %v1109 = vmul.f32 %v1082, %v1101
      %v1110 = vmul.f32 %v1083, %v1102
      %v1111 = vmul.f32 %v1084, %v1103
      %v1112 = vmul.f32 %v1085, %v1104
      %v1113 = vsel %vm1092, %v1109, 0.0
      %v1114 = vsel %vm1092, %v1110, 0.0
      %v1115 = vadd.f32 %v1113, %v1114
      %v1116 = vsel %vm1092, %v1111, 0.0
      %v1117 = vadd.f32 %v1115, %v1116
      %v1118 = vsel %vm1092, %v1112, 0.0
      %v1119 = vadd.f32 %v1117, %v1118
      %1120 = vadd.xlane.f32.xlu0 %v1119
      %v1121 = vpop.xlane.xlu0 %1120
      %v1122 = vmul.f32 %v1109, %v1082
      %v1123 = vmul.f32 %v1110, %v1083
      %v1124 = vmul.f32 %v1111, %v1084
      %v1125 = vmul.f32 %v1112, %v1085
      %v1126 = vsel %vm1092, %v1122, 0.0
      %v1127 = vsel %vm1092, %v1123, 0.0
      %v1128 = vadd.f32 %v1126, %v1127
      %v1129 = vsel %vm1092, %v1124, 0.0
      %v1130 = vadd.f32 %v1128, %v1129
      %v1131 = vsel %vm1092, %v1125, 0.0
      %v1132 = vadd.f32 %v1130, %v1131
      %1133 = vadd.xlane.f32.xlu0 %v1132
      %v1134 = vpop.xlane.xlu0 %1133
      %v1135 = vlaneseq
      %v1136 = vand.u32 %v1135, 127
      %vm1137 = vcmp.eq.s32.totalorder %v1136, 0
      %v1138 = vsel %vm1137, %v1121, 0.0
      %vm1139 = vcmp.eq.s32.totalorder %v1136, 1
      %v1140 = vsel %vm1139, %v1134, 0.0
      %v1141 = vadd.f32 %v1138, %v1140
      %1142 = vst [vmem:[%s273] sm:$0xf] %v1141
      %s1143 = smul.u32 4, %s21
      %p1144 = scmp.lt.s32.totalorder %s20, 0
      %s1145 = scalar_select %p1144, %s20, 0
      %p1146 = scmp.lt.s32.totalorder %s1143, 7
      %s1147 = scalar_select %p1146, %s1143, 7
      %s1148 = smul.addr %s1145, 8
      %s1149 = sadd.s32 %s1147, %s1148
      %s1150 = smul.addr %s1149, 4
      %s1151 = scalar_lea.vmem %s3, %s1150
      %p1152 = scmp.lt.s32.totalorder %s21, 1
      %s1153 = scalar_select %p1152, %s21, 1
      %p1154 = scmp.lt.s32.totalorder %s20, 0
      %s1155 = scalar_select %p1154, %s20, 0
      %s1156 = sadd.s32 %s1155, %s1153
      %s1157 = smul.addr %s1156, 4
      %s1158 = scalar_lea.vmem %s4, %s1157
      // Predicated region
      $region33: #{residual_block.2} parent=31 // pred_check
        %p1159 = pneg %p126
      $region34: #{residual_block.2} parent=31 // pred_check_branch
        %1161 = sbr.rel (%p1159) target = $region36
      $region35: #{residual_block.2} parent=31 // pred_region
        %s1162 = smul.u32 4, %s21
      $region36: #{residual_block.2} parent=31 // pred_fallthru
        _
      // Predicated region
      $region37: #{residual_block.2} parent=31 // pred_check
        %p1163 = pneg %p154
      $region38: #{residual_block.2} parent=31 // pred_check_branch
        %1165 = sbr.rel (%p1163) target = $region40
      $region39: #{residual_block.2} parent=31 // pred_region
        _
      $region40: #{residual_block.2} parent=31 // pred_fallthru
        _
    $region32: #{residual_block.2} parent=5 // pred_fallthru
      _
    %p1166 = scmp.le.s32.totalorder 2, %s11
    // Predicated region
    $region41: #{residual_block.2} parent=5 // pred_check
      %p1167 = pneg %p1166
    $region42: #{residual_block.2} parent=5 // pred_check_branch
      %1169 = sbr.rel (%p1167) target = $region44
    $region43: #{residual_block.2} parent=5 // pred_region
      %s1170 = ssub.s32 %s11, 2
      // Predicated region
      $region45: #{residual_block.2} parent=43 // pred_check
        %p1171 = pneg %p132
      $region46: #{residual_block.2} parent=43 // pred_check_branch
        %1173 = sbr.rel (%p1171) target = $region48
      $region47: #{residual_block.2} parent=43 // pred_region
        %s1174 = smul.u32 4, %s23
        %p1175 = scmp.lt.s32.totalorder %s22, 0
        %s1176 = scalar_select %p1175, %s22, 0
        %p1177 = scmp.lt.s32.totalorder %s1174, 7
        %s1178 = scalar_select %p1177, %s1174, 7
        %s1179 = smul.addr %s1176, 8
        %s1180 = sadd.s32 %s1178, %s1179
        %s1181 = smul.addr %s1180, 4
        %s1182 = scalar_lea.vmem %s3, %s1181
      $region48: #{residual_block.2} parent=43 // pred_fallthru
        _
      // Predicated region
      $region49: #{residual_block.2} parent=43 // pred_check
        %p1183 = pneg %p160
      $region50: #{residual_block.2} parent=43 // pred_check_branch
        %1185 = sbr.rel (%p1183) target = $region52
      $region51: #{residual_block.2} parent=43 // pred_region
        %p1186 = scmp.lt.s32.totalorder %s23, 1
        %s1187 = scalar_select %p1186, %s23, 1
        %p1188 = scmp.lt.s32.totalorder %s22, 0
        %s1189 = scalar_select %p1188, %s22, 0
        %s1190 = sadd.s32 %s1189, %s1187
        %s1191 = smul.addr %s1190, 4
        %s1192 = scalar_lea.vmem %s4, %s1191
      $region52: #{residual_block.2} parent=43 // pred_fallthru
        _
    $region44: #{residual_block.2} parent=5 // pred_fallthru
      _
  $region6: #{residual_block.2} parent=0 // loop_footer
    %s15 = sadd.s32 1, %s11
  $region7: #{residual_block.2} parent=0 // loop_footer_branch
    %10 = sbr.rel target = $region3
  $region8: #{residual_block.2} parent=0 // loop_exit
    _

</llo_original>
